<compile_context>
chip_gen: v5e
topology: v5e:2x2
jax: 0.10.0
libtpu: 0.0.40
codegen_flags: <defaults>
</compile_context>

<pallas_src>
import functools

import jax
import jax.numpy as jnp
from jax.experimental import pallas as pl
from jax.experimental.pallas import tpu as pltpu

BACKBONE_DIM = 1280       # efficientnet_b1.num_features
NUM_CLASSES = 3
H1_DIM, C1_DIM = 256, 64  # first-layer widths of classifier / confidence heads
FUSED1 = 384              # 256 + 64, padded to 3*128 lanes
FUSED2 = 256              # 128 (h2) + 64 (c1 pass-through), 2*128 lanes
OUT_PAD = 128             # lane-dense head output: cols 0..2 logits, col 3 conf
CONF_COL = NUM_CLASSES    # column holding the confidence pre-activation
POOL_PAD = 128            # lane-padded width of the per-channel pooling scratch
LANE_CHUNK_TARGET = 4096  # max x lanes per grid step (VMEM use independent of H*W)
MAX_BATCH_TILE = 256


def _round_up(x, m):
    return (x + m - 1) // m * m


def _ensemble_kernel(x_ref, wproj_ref, bproj_ref, wh_ref, bh_ref,
                     wc_ref, bc_ref, wo_ref, bo_ref,
                     feat_ref, head_ref, pooled_ref, *, hw, chunked):
    f32, bf16 = jnp.float32, jnp.bfloat16
    j = pl.program_id(1)
    num_ch = wproj_ref.shape[0]
    tl = x_ref.shape[-1]

    @pl.when(j == 0)
    def _init():
        pooled_ref[...] = jnp.zeros_like(pooled_ref)

    col = jax.lax.broadcasted_iota(jnp.int32, pooled_ref.shape, 1)  # (TB, 128)

    if chunked:
        # Each chunk lies inside exactly one channel (tl divides hw): single
        # unmasked lane reduction, channel column selected by comparing j
        # against static per-column bounds (no scalar division, no lane masks).
        s = jnp.sum(x_ref[...].astype(f32), axis=-1, keepdims=True)  # (TB, 1)
        cpc = hw // tl                                               # chunks/channel
        in_ch = (j >= col * cpc) & (j < (col + 1) * cpc)
        pooled_ref[...] += jnp.where(in_ch, s, 0.0)
    else:
        # Single full-extent chunk: static per-channel lane slices.
        chunk = x_ref[...].astype(f32)                               # (TB, C*HW)
        upd = jnp.zeros(pooled_ref.shape, f32)
        for c in range(num_ch):
            s = jnp.sum(chunk[:, c * hw:(c + 1) * hw], axis=-1, keepdims=True)
            upd = jnp.where(col == c, s, upd)
        pooled_ref[...] += upd

    @pl.when(j == pl.num_programs(1) - 1)
    def _heads():
        pooled = pooled_ref[...]                                     # (TB, 128) f32
        # Backbone stand-in: features = mean-pool @ wproj + bproj (1/HW folded
        # into wproj).  Contracting dim == C (3-4) -> C VPU broadcast-FMAs.
        features = pooled[:, 0:1] * wproj_ref[0:1, :]
        for c in range(1, num_ch):
            features = features + pooled[:, c:c + 1] * wproj_ref[c:c + 1, :]
        features = features + bproj_ref[...]                         # (TB, 1280) f32
        feat_ref[...] = features.astype(feat_ref.dtype)

        # Fused first layers of both heads: 1280 -> [h1(256) | c1(64) | 0].
        fused = jnp.maximum(
            jnp.dot(features.astype(bf16), wh_ref[...],
                    preferred_element_type=f32) + bh_ref[...], 0.0)
        # Classifier layer 2; c1 rides through an identity block (ReLU is a
        # no-op on the non-negative c1) -> [h2(128) | c1(64) | 0].
        hc = jnp.maximum(
            jnp.dot(fused.astype(bf16), wc_ref[...],
                    preferred_element_type=f32) + bc_ref[...], 0.0)
        # Fused lane-dense final layer: cols 0..2 logits, col 3 confidence.
        raw = jnp.dot(hc.astype(bf16), wo_ref[...],
                      preferred_element_type=f32) + bo_ref[...]
        lane = jax.lax.broadcasted_iota(jnp.int32, raw.shape, 1)
        head_ref[...] = jnp.where(lane == CONF_COL, jax.nn.sigmoid(raw),
                                  raw).astype(head_ref.dtype)


def _pack_params(params, hw):
    """Fuse / lane-pad the per-layer parameters into the kernel's weight set."""
    f32, bf16 = jnp.float32, jnp.bfloat16

    wproj = (params["wproj"] / hw).astype(f32)            # fold mean's 1/HW; f32
    bproj = params["bproj"].astype(f32)

    wh = jnp.zeros((BACKBONE_DIM, FUSED1), f32)
    wh = wh.at[:, :H1_DIM].set(params["w1"])
    wh = wh.at[:, H1_DIM:H1_DIM + C1_DIM].set(params["wc1"])
    bh = jnp.zeros((1, FUSED1), f32)
    bh = bh.at[:, :H1_DIM].set(params["b1"])
    bh = bh.at[:, H1_DIM:H1_DIM + C1_DIM].set(params["bc1"])

    wc = jnp.zeros((FUSED1, FUSED2), f32)
    wc = wc.at[:H1_DIM, :128].set(params["w2"])
    wc = wc.at[H1_DIM:H1_DIM + C1_DIM, 128:128 + C1_DIM].set(
        jnp.eye(C1_DIM, dtype=f32))
    bc = jnp.zeros((1, FUSED2), f32)
    bc = bc.at[:, :128].set(params["b2"])

    wo = jnp.zeros((FUSED2, OUT_PAD), f32)
    wo = wo.at[:128, :NUM_CLASSES].set(params["w3"])
    wo = wo.at[128:128 + C1_DIM, CONF_COL:CONF_COL + 1].set(params["wc2"])
    bo = jnp.zeros((1, OUT_PAD), f32)
    bo = bo.at[:, :NUM_CLASSES].set(params["b3"])
    bo = bo.at[:, CONF_COL:CONF_COL + 1].set(params["bc2"])

    return dict(wproj=wproj, bproj=bproj,
                wh=wh.astype(bf16), bh=bh,
                wc=wc.astype(bf16), bc=bc,
                wo=wo.astype(bf16), bo=bo)


def _pick_batch_tile(b):
    if b <= 8:
        return _round_up(b, 8)
    # >= 2 batch tiles so both v7x TensorCores / megacore "parallel" get work.
    return min(MAX_BATCH_TILE, _round_up(-(-b // 2), 8))


def _pick_lane_chunk(hw, chw, lane_chunk):
    if lane_chunk is not None:
        assert lane_chunk == chw or (lane_chunk % 128 == 0 and hw % lane_chunk == 0), (
            "lane_chunk must equal C*H*W or be a 128-multiple dividing H*W")
        return lane_chunk
    if hw % 128 == 0 and chw > LANE_CHUNK_TARGET:
        for k in range(LANE_CHUNK_TARGET // 128, 0, -1):
            if hw % (128 * k) == 0:
                return 128 * k
    return chw


def simple_ensemble_forward(x, params, *, lane_chunk=None,
                            features_dtype=jnp.float32):
    """x: (B, C, H, W) float32 NCHW. Returns dict(logits, confidence, features).

    features_dtype=jnp.bfloat16 halves the largest kernel output stream if the
    consumer tolerates it; the default keeps the module's f32 semantics.
    """
    B, C, H, W = x.shape
    HW = H * W
    CHW = C * HW
    assert C <= POOL_PAD
    packed = _pack_params(params, HW)

    TB = _pick_batch_tile(B)
    TL = _pick_lane_chunk(HW, CHW, lane_chunk)
    nb = pl.cdiv(B, TB)
    nl = pl.cdiv(CHW, TL)
    chunked = TL != CHW
    # Outputs are allocated at whole batch tiles; x itself is never padded or
    # copied.  Tail-tile garbage rows are row-local and sliced off below.
    B_pad = nb * TB

    # Free reshape to a lane-dense 2-D view; x stays f32 in HBM (no cast/pad copy).
    x2d = x.reshape(B, CHW)

    kernel = functools.partial(_ensemble_kernel, hw=HW, chunked=chunked)

    def _const(shape):
        return pl.BlockSpec(shape, lambda i, j: (0, 0))   # VMEM-resident weights

    feat_pad, head_pad = pl.pallas_call(
        kernel,
        out_shape=(jax.ShapeDtypeStruct((B_pad, BACKBONE_DIM), features_dtype),
                   jax.ShapeDtypeStruct((B_pad, OUT_PAD), jnp.float32)),
        grid_spec=pltpu.PrefetchScalarGridSpec(
            num_scalar_prefetch=0,
            grid=(nb, nl),
            in_specs=[
                pl.BlockSpec((TB, TL), lambda i, j: (i, j)),       # x chunks
                _const((C, BACKBONE_DIM)), _const((1, BACKBONE_DIM)),
                _const((BACKBONE_DIM, FUSED1)), _const((1, FUSED1)),
                _const((FUSED1, FUSED2)), _const((1, FUSED2)),
                _const((FUSED2, OUT_PAD)), _const((1, OUT_PAD)),
            ],
            out_specs=(pl.BlockSpec((TB, BACKBONE_DIM), lambda i, j: (i, 0)),
                       pl.BlockSpec((TB, OUT_PAD), lambda i, j: (i, 0))),
            scratch_shapes=[pltpu.VMEM((TB, POOL_PAD), jnp.float32)]),
        compiler_params=pltpu.CompilerParams(
            dimension_semantics=("parallel", "arbitrary"),
            # Working set (x double-buffers + weights + outputs + scratch) stays
            # well under ~20 MiB for any image size with TB<=256 / TL<=4096, so
            # one limit is safe on v5e/v6e/v7x (and lifts v5e's 16 MiB default).
            vmem_limit_bytes=48 * 1024 * 1024),
    )(x2d, packed["wproj"], packed["bproj"], packed["wh"], packed["bh"],
      packed["wc"], packed["bc"], packed["wo"], packed["bo"])

    feat = feat_pad[:B] if B_pad != B else feat_pad
    head = head_pad[:B] if B_pad != B else head_pad
    return {"logits": head[:, :NUM_CLASSES],
            "confidence": head[:, CONF_COL:CONF_COL + 1],
            "features": feat}


def init_params(key, in_channels):
    """Deterministic init mimicking nn.Linear default (uniform +/- 1/sqrt(fan_in)).
    Weights are stored as (in_features, out_features)."""
    def linear(k, fan_in, fan_out):
        kw, kb = jax.random.split(k)
        bound = 1.0 / jnp.sqrt(fan_in)
        w = jax.random.uniform(kw, (fan_in, fan_out), jnp.float32, -bound, bound)
        b = jax.random.uniform(kb, (1, fan_out), jnp.float32, -bound, bound)
        return w, b

    keys = jax.random.split(key, 6)
    wproj, bproj = linear(keys[0], in_channels, BACKBONE_DIM)
    w1, b1 = linear(keys[1], BACKBONE_DIM, H1_DIM)
    w2, b2 = linear(keys[2], H1_DIM, 128)
    w3, b3 = linear(keys[3], 128, NUM_CLASSES)
    wc1, bc1 = linear(keys[4], BACKBONE_DIM, C1_DIM)
    wc2, bc2 = linear(keys[5], C1_DIM, 1)
    return dict(wproj=wproj, bproj=bproj,
                w1=w1, b1=b1, w2=w2, b2=b2, w3=w3, b3=b3,
                wc1=wc1, bc1=bc1, wc2=wc2, bc2=bc2)


def _reference_forward(x, params):
    """Pure-JAX f32 reference of the same forward semantics."""
    B, C, H, W = x.shape
    pooled = jnp.mean(x.reshape(B, C, H * W), axis=-1)
    features = pooled @ params["wproj"] + params["bproj"]
    h1 = jax.nn.relu(features @ params["w1"] + params["b1"])
    h2 = jax.nn.relu(h1 @ params["w2"] + params["b2"])
    logits = h2 @ params["w3"] + params["b3"]
    c1 = jax.nn.relu(features @ params["wc1"] + params["bc1"])
    confidence = jax.nn.sigmoid(c1 @ params["wc2"] + params["bc2"])
    return {"logits": logits, "confidence": confidence, "features": features}


if __name__ == "__main__":
    key = jax.random.PRNGKey(0)
    kx, kp, kx2, kp2 = jax.random.split(key, 4)

    fwd = jax.jit(simple_ensemble_forward,
                  static_argnames=("lane_chunk", "features_dtype"))

    # --- small-shape check (single chunk, single batch tile) ----------------
    B, C, H, W = 2, 4, 16, 16
    x = jax.random.normal(kx, (B, C, H, W), jnp.float32)
    params = init_params(kp, C)
    out = fwd(x, params)
    jax.block_until_ready(out)

    assert out["logits"].shape == (B, NUM_CLASSES)
    assert out["confidence"].shape == (B, 1)
    assert out["features"].shape == (B, BACKBONE_DIM)
    assert bool(jnp.all((out["confidence"] >= 0.0) & (out["confidence"] <= 1.0)))

    ref = _reference_forward(x, params)
    assert bool(jnp.allclose(out["features"], ref["features"], atol=5e-3, rtol=5e-3))
    assert bool(jnp.allclose(out["logits"], ref["logits"], atol=5e-2, rtol=5e-2))
    assert bool(jnp.allclose(out["confidence"], ref["confidence"], atol=5e-2, rtol=5e-2))

    # --- multi-chunk / multi-batch-tile / ragged-tail check -----------------
    B2, C2, H2, W2 = 10, 3, 16, 16        # 2 batch tiles (ragged tail), 6 HW chunks
    x2 = jax.random.normal(kx2, (B2, C2, H2, W2), jnp.float32)
    params2 = init_params(kp2, C2)
    out2 = fwd(x2, params2, lane_chunk=128)
    jax.block_until_ready(out2)

    ref2 = _reference_forward(x2, params2)
    assert out2["logits"].shape == (B2, NUM_CLASSES)
    assert bool(jnp.allclose(out2["features"], ref2["features"], atol=5e-3, rtol=5e-3))
    assert bool(jnp.allclose(out2["logits"], ref2["logits"], atol=5e-2, rtol=5e-2))
    assert bool(jnp.allclose(out2["confidence"], ref2["confidence"], atol=5e-2, rtol=5e-2))

    print("KERNEL_OK")
</pallas_src>

<mosaic_0001>
module attributes {stable_mosaic.version = 11 : i64} {
  func.func @_ensemble_kernel(%arg0: i32, %arg1: i32, %arg2: memref<8x1024xf32, #tpu.memory_space<vmem>>, %arg3: memref<4x1280xf32, #tpu.memory_space<vmem>>, %arg4: memref<1x1280xf32, #tpu.memory_space<vmem>>, %arg5: memref<1280x384xbf16, #tpu.memory_space<vmem>>, %arg6: memref<1x384xf32, #tpu.memory_space<vmem>>, %arg7: memref<384x256xbf16, #tpu.memory_space<vmem>>, %arg8: memref<1x256xf32, #tpu.memory_space<vmem>>, %arg9: memref<256x128xbf16, #tpu.memory_space<vmem>>, %arg10: memref<1x128xf32, #tpu.memory_space<vmem>>, %arg11: memref<8x1280xf32, #tpu.memory_space<vmem>>, %arg12: memref<8x128xf32, #tpu.memory_space<vmem>>, %arg13: memref<8x128xf32, #tpu.memory_space<vmem>>) attributes {dimension_semantics = [#tpu.dimension_semantics<parallel>, #tpu.dimension_semantics<arbitrary>], iteration_bounds = array<i64: 1, 1>, scalar_prefetch = 0 : i64, scratch_operands = 1 : i64, tpu.core_type = #tpu.core_type<tc>, window_params = [{transform_indices = @transform_0, window_bounds = array<i64: 8, 1024>}, {pipeline_mode = #tpu.pipeline_mode<synchronous>, transform_indices = @transform_1, window_bounds = array<i64: 4, 1280>}, {pipeline_mode = #tpu.pipeline_mode<synchronous>, transform_indices = @transform_2, window_bounds = array<i64: 1, 1280>}, {pipeline_mode = #tpu.pipeline_mode<synchronous>, transform_indices = @transform_3, window_bounds = array<i64: 1280, 384>}, {pipeline_mode = #tpu.pipeline_mode<synchronous>, transform_indices = @transform_4, window_bounds = array<i64: 1, 384>}, {pipeline_mode = #tpu.pipeline_mode<synchronous>, transform_indices = @transform_5, window_bounds = array<i64: 384, 256>}, {pipeline_mode = #tpu.pipeline_mode<synchronous>, transform_indices = @transform_6, window_bounds = array<i64: 1, 256>}, {pipeline_mode = #tpu.pipeline_mode<synchronous>, transform_indices = @transform_7, window_bounds = array<i64: 256, 128>}, {pipeline_mode = #tpu.pipeline_mode<synchronous>, transform_indices = @transform_8, window_bounds = array<i64: 1, 128>}, {transform_indices = @transform_9, window_bounds = array<i64: 8, 1280>}, {transform_indices = @transform_10, window_bounds = array<i64: 8, 128>}]} {
    %c0_i32 = arith.constant 0 : i32
    %0 = arith.cmpi eq, %arg1, %c0_i32 : i32
    %1 = arith.extui %0 : i1 to i32
    %c0_i32_0 = arith.constant 0 : i32
    %2 = arith.cmpi ne, %1, %c0_i32_0 : i32
    scf.if %2 {
      %cst_13 = arith.constant 0.000000e+00 : f32
      %44 = vector.broadcast %cst_13 : f32 to vector<8x128xf32>
      %c0_14 = arith.constant 0 : index
      %c0_15 = arith.constant 0 : index
      %45 = vector.load %arg13[%c0_14, %c0_15] : memref<8x128xf32, #tpu.memory_space<vmem>>, vector<8x128xf32>
      tpu.vector_store %arg13[%c0_14, %c0_15], %44 {strides = array<i32>} : memref<8x128xf32, #tpu.memory_space<vmem>>, vector<8x128xf32>,
    } else {
    }
    %3 = tpu.iota {dimensions = array<i32: 1>} : vector<8x128xi32>
    %c0 = arith.constant 0 : index
    %c0_1 = arith.constant 0 : index
    %4 = vector.load %arg2[%c0, %c0_1] : memref<8x1024xf32, #tpu.memory_space<vmem>>, vector<8x1024xf32>
    %cst = arith.constant 0.000000e+00 : f32
    %5 = vector.broadcast %cst : f32 to vector<8x128xf32>
    %6 = vector.extract_strided_slice %4 {offsets = [0, 0], sizes = [8, 256], strides = [1, 1]} : vector<8x1024xf32> to vector<8x256xf32>
    %cst_2 = arith.constant dense<0.000000e+00> : vector<8xf32>
    %7 = vector.multi_reduction <add>, %6, %cst_2 [1] : vector<8x256xf32> to vector<8xf32>
    %8 = vector.shape_cast %7 : vector<8xf32> to vector<8x1xf32>
    %c0_i32_3 = arith.constant 0 : i32
    %9 = vector.broadcast %c0_i32_3 : i32 to vector<8x128xi32>
    %10 = arith.cmpi eq, %3, %9 : vector<8x128xi32>
    %11 = vector.shape_cast %8 : vector<8x1xf32> to vector<8x1xf32>
    %12 = vector.broadcast %11 : vector<8x1xf32> to vector<8x128xf32>
    %13 = arith.select %10, %12, %5 : vector<8x128xi1>, vector<8x128xf32>
    %14 = vector.extract_strided_slice %4 {offsets = [0, 256], sizes = [8, 256], strides = [1, 1]} : vector<8x1024xf32> to vector<8x256xf32>
    %cst_4 = arith.constant dense<0.000000e+00> : vector<8xf32>
    %15 = vector.multi_reduction <add>, %14, %cst_4 [1] : vector<8x256xf32> to vector<8xf32>
    %16 = vector.shape_cast %15 : vector<8xf32> to vector<8x1xf32>
    %c1_i32 = arith.constant 1 : i32
    %17 = vector.broadcast %c1_i32 : i32 to vector<8x128xi32>
    %18 = arith.cmpi eq, %3, %17 : vector<8x128xi32>
    %19 = vector.shape_cast %16 : vector<8x1xf32> to vector<8x1xf32>
    %20 = vector.broadcast %19 : vector<8x1xf32> to vector<8x128xf32>
    %21 = arith.select %18, %20, %13 : vector<8x128xi1>, vector<8x128xf32>
    %22 = vector.extract_strided_slice %4 {offsets = [0, 512], sizes = [8, 256], strides = [1, 1]} : vector<8x1024xf32> to vector<8x256xf32>
    %cst_5 = arith.constant dense<0.000000e+00> : vector<8xf32>
    %23 = vector.multi_reduction <add>, %22, %cst_5 [1] : vector<8x256xf32> to vector<8xf32>
    %24 = vector.shape_cast %23 : vector<8xf32> to vector<8x1xf32>
    %c2_i32 = arith.constant 2 : i32
    %25 = vector.broadcast %c2_i32 : i32 to vector<8x128xi32>
    %26 = arith.cmpi eq, %3, %25 : vector<8x128xi32>
    %27 = vector.shape_cast %24 : vector<8x1xf32> to vector<8x1xf32>
    %28 = vector.broadcast %27 : vector<8x1xf32> to vector<8x128xf32>
    %29 = arith.select %26, %28, %21 : vector<8x128xi1>, vector<8x128xf32>
    %30 = vector.extract_strided_slice %4 {offsets = [0, 768], sizes = [8, 256], strides = [1, 1]} : vector<8x1024xf32> to vector<8x256xf32>
    %cst_6 = arith.constant dense<0.000000e+00> : vector<8xf32>
    %31 = vector.multi_reduction <add>, %30, %cst_6 [1] : vector<8x256xf32> to vector<8xf32>
    %32 = vector.shape_cast %31 : vector<8xf32> to vector<8x1xf32>
    %c3_i32 = arith.constant 3 : i32
    %33 = vector.broadcast %c3_i32 : i32 to vector<8x128xi32>
    %34 = arith.cmpi eq, %3, %33 : vector<8x128xi32>
    %35 = vector.shape_cast %32 : vector<8x1xf32> to vector<8x1xf32>
    %36 = vector.broadcast %35 : vector<8x1xf32> to vector<8x128xf32>
    %37 = arith.select %34, %36, %29 : vector<8x128xi1>, vector<8x128xf32>
    %c0_7 = arith.constant 0 : index
    %c0_8 = arith.constant 0 : index
    %38 = vector.load %arg13[%c0_7, %c0_8] : memref<8x128xf32, #tpu.memory_space<vmem>>, vector<8x128xf32>
    %39 = arith.addf %38, %37 : vector<8x128xf32>
    %c0_9 = arith.constant 0 : index
    %c0_10 = arith.constant 0 : index
    %40 = vector.load %arg13[%c0_9, %c0_10] : memref<8x128xf32, #tpu.memory_space<vmem>>, vector<8x128xf32>
    tpu.vector_store %arg13[%c0_9, %c0_10], %39 {strides = array<i32>} : memref<8x128xf32, #tpu.memory_space<vmem>>, vector<8x128xf32>,
    %c0_i32_11 = arith.constant 0 : i32
    %41 = arith.cmpi eq, %arg1, %c0_i32_11 : i32
    %42 = arith.extui %41 : i1 to i32
    %c0_i32_12 = arith.constant 0 : i32
    %43 = arith.cmpi ne, %42, %c0_i32_12 : i32
    scf.if %43 {
      %c0_13 = arith.constant 0 : index
      %c0_14 = arith.constant 0 : index
      %44 = vector.load %arg13[%c0_13, %c0_14] : memref<8x128xf32, #tpu.memory_space<vmem>>, vector<8x128xf32>
      %45 = vector.extract_strided_slice %44 {offsets = [0, 0], sizes = [8, 1], strides = [1, 1]} : vector<8x128xf32> to vector<8x1xf32>
      %c0_15 = arith.constant 0 : index
      %c0_16 = arith.constant 0 : index
      %46 = vector.load %arg3[%c0_15, %c0_16] : memref<4x1280xf32, #tpu.memory_space<vmem>>, vector<1x1280xf32>
      %47 = vector.broadcast %45 : vector<8x1xf32> to vector<8x1280xf32>
      %48 = vector.broadcast %46 : vector<1x1280xf32> to vector<8x1280xf32>
      %49 = arith.mulf %47, %48 : vector<8x1280xf32>
      %50 = vector.extract_strided_slice %44 {offsets = [0, 1], sizes = [8, 1], strides = [1, 1]} : vector<8x128xf32> to vector<8x1xf32>
      %c1 = arith.constant 1 : index
      %c0_17 = arith.constant 0 : index
      %51 = vector.load %arg3[%c1, %c0_17] : memref<4x1280xf32, #tpu.memory_space<vmem>>, vector<1x1280xf32>
      %52 = vector.broadcast %50 : vector<8x1xf32> to vector<8x1280xf32>
      %53 = vector.broadcast %51 : vector<1x1280xf32> to vector<8x1280xf32>
      %54 = arith.mulf %52, %53 : vector<8x1280xf32>
      %55 = arith.addf %49, %54 : vector<8x1280xf32>
      %56 = vector.extract_strided_slice %44 {offsets = [0, 2], sizes = [8, 1], strides = [1, 1]} : vector<8x128xf32> to vector<8x1xf32>
      %c2 = arith.constant 2 : index
      %c0_18 = arith.constant 0 : index
      %57 = vector.load %arg3[%c2, %c0_18] : memref<4x1280xf32, #tpu.memory_space<vmem>>, vector<1x1280xf32>
      %58 = vector.broadcast %56 : vector<8x1xf32> to vector<8x1280xf32>
      %59 = vector.broadcast %57 : vector<1x1280xf32> to vector<8x1280xf32>
      %60 = arith.mulf %58, %59 : vector<8x1280xf32>
      %61 = arith.addf %55, %60 : vector<8x1280xf32>
      %62 = vector.extract_strided_slice %44 {offsets = [0, 3], sizes = [8, 1], strides = [1, 1]} : vector<8x128xf32> to vector<8x1xf32>
      %c3 = arith.constant 3 : index
      %c0_19 = arith.constant 0 : index
      %63 = vector.load %arg3[%c3, %c0_19] : memref<4x1280xf32, #tpu.memory_space<vmem>>, vector<1x1280xf32>
      %64 = vector.broadcast %62 : vector<8x1xf32> to vector<8x1280xf32>
      %65 = vector.broadcast %63 : vector<1x1280xf32> to vector<8x1280xf32>
      %66 = arith.mulf %64, %65 : vector<8x1280xf32>
      %67 = arith.addf %61, %66 : vector<8x1280xf32>
      %c0_20 = arith.constant 0 : index
      %c0_21 = arith.constant 0 : index
      %68 = vector.load %arg4[%c0_20, %c0_21] : memref<1x1280xf32, #tpu.memory_space<vmem>>, vector<1x1280xf32>
      %69 = vector.broadcast %68 : vector<1x1280xf32> to vector<8x1280xf32>
      %70 = arith.addf %67, %69 : vector<8x1280xf32>
      %c0_22 = arith.constant 0 : index
      %c0_23 = arith.constant 0 : index
      %71 = vector.load %arg11[%c0_22, %c0_23] : memref<8x1280xf32, #tpu.memory_space<vmem>>, vector<8x1280xf32>
      tpu.vector_store %arg11[%c0_22, %c0_23], %70 {strides = array<i32>} : memref<8x1280xf32, #tpu.memory_space<vmem>>, vector<8x1280xf32>,
      %72 = arith.truncf %70 : vector<8x1280xf32> to vector<8x1280xbf16>
      %c0_24 = arith.constant 0 : index
      %c0_25 = arith.constant 0 : index
      %73 = vector.load %arg5[%c0_24, %c0_25] : memref<1280x384xbf16, #tpu.memory_space<vmem>>, vector<1280x384xbf16>
      %cst_26 = arith.constant dense<0.000000e+00> : vector<8x384xf32>
      %74 = tpu.matmul %72, %73, %cst_26 {dimension_numbers = #tpu.dot_dimension_numbers<[1], [0], [0], [1], [0, 0, 1, 1], [], []>} : vector<8x1280xbf16>, vector<1280x384xbf16>, vector<8x384xf32> -> vector<8x384xf32>
      %c0_27 = arith.constant 0 : index
      %c0_28 = arith.constant 0 : index
      %75 = vector.load %arg6[%c0_27, %c0_28] : memref<1x384xf32, #tpu.memory_space<vmem>>, vector<1x384xf32>
      %76 = vector.broadcast %75 : vector<1x384xf32> to vector<8x384xf32>
      %77 = arith.addf %74, %76 : vector<8x384xf32>
      %cst_29 = arith.constant 0.000000e+00 : f32
      %78 = vector.broadcast %cst_29 : f32 to vector<8x384xf32>
      %79 = arith.maximumf %77, %78 : vector<8x384xf32>
      %80 = arith.truncf %79 : vector<8x384xf32> to vector<8x384xbf16>
      %c0_30 = arith.constant 0 : index
      %c0_31 = arith.constant 0 : index
      %81 = vector.load %arg7[%c0_30, %c0_31] : memref<384x256xbf16, #tpu.memory_space<vmem>>, vector<384x256xbf16>
      %cst_32 = arith.constant dense<0.000000e+00> : vector<8x256xf32>
      %82 = tpu.matmul %80, %81, %cst_32 {dimension_numbers = #tpu.dot_dimension_numbers<[1], [0], [0], [1], [0, 0, 1, 1], [], []>} : vector<8x384xbf16>, vector<384x256xbf16>, vector<8x256xf32> -> vector<8x256xf32>
      %c0_33 = arith.constant 0 : index
      %c0_34 = arith.constant 0 : index
      %83 = vector.load %arg8[%c0_33, %c0_34] : memref<1x256xf32, #tpu.memory_space<vmem>>, vector<1x256xf32>
      %84 = vector.broadcast %83 : vector<1x256xf32> to vector<8x256xf32>
      %85 = arith.addf %82, %84 : vector<8x256xf32>
      %cst_35 = arith.constant 0.000000e+00 : f32
      %86 = vector.broadcast %cst_35 : f32 to vector<8x256xf32>
      %87 = arith.maximumf %85, %86 : vector<8x256xf32>
      %88 = arith.truncf %87 : vector<8x256xf32> to vector<8x256xbf16>
      %c0_36 = arith.constant 0 : index
      %c0_37 = arith.constant 0 : index
      %89 = vector.load %arg9[%c0_36, %c0_37] : memref<256x128xbf16, #tpu.memory_space<vmem>>, vector<256x128xbf16>
      %cst_38 = arith.constant dense<0.000000e+00> : vector<8x128xf32>
      %90 = tpu.matmul %88, %89, %cst_38 {dimension_numbers = #tpu.dot_dimension_numbers<[1], [0], [0], [1], [0, 0, 1, 1], [], []>} : vector<8x256xbf16>, vector<256x128xbf16>, vector<8x128xf32> -> vector<8x128xf32>
      %c0_39 = arith.constant 0 : index
      %c0_40 = arith.constant 0 : index
      %91 = vector.load %arg10[%c0_39, %c0_40] : memref<1x128xf32, #tpu.memory_space<vmem>>, vector<1x128xf32>
      %92 = vector.broadcast %91 : vector<1x128xf32> to vector<8x128xf32>
      %93 = arith.addf %90, %92 : vector<8x128xf32>
      %94 = tpu.iota {dimensions = array<i32: 1>} : vector<8x128xi32>
      %c3_i32_41 = arith.constant 3 : i32
      %95 = vector.broadcast %c3_i32_41 : i32 to vector<8x128xi32>
      %96 = arith.cmpi eq, %94, %95 : vector<8x128xi32>
      %97 = arith.negf %93 : vector<8x128xf32>
      %98 = math.exp %97 : vector<8x128xf32>
      %cst_42 = arith.constant 1.000000e+00 : f32
      %99 = vector.broadcast %cst_42 : f32 to vector<8x128xf32>
      %100 = arith.addf %99, %98 : vector<8x128xf32>
      %101 = arith.divf %99, %100 : vector<8x128xf32>
      %102 = arith.select %96, %101, %93 : vector<8x128xi1>, vector<8x128xf32>
      %c0_43 = arith.constant 0 : index
      %c0_44 = arith.constant 0 : index
      %103 = vector.load %arg12[%c0_43, %c0_44] : memref<8x128xf32, #tpu.memory_space<vmem>>, vector<8x128xf32>
      tpu.vector_store %arg12[%c0_43, %c0_44], %102 {strides = array<i32>} : memref<8x128xf32, #tpu.memory_space<vmem>>, vector<8x128xf32>,
    } else {
    }
    return
  }
  func.func @transform_0(%arg0: i32, %arg1: i32) -> (i32, i32) {
    %c0_i32 = arith.constant 0 : i32
    return %arg0, %arg1 : i32, i32
  }
  func.func @transform_1(%arg0: i32, %arg1: i32) -> (i32, i32) {
    %c0_i32 = arith.constant 0 : i32
    %c0_i32_0 = arith.constant 0 : i32
    %c0_i32_1 = arith.constant 0 : i32
    return %c0_i32, %c0_i32_0 : i32, i32
  }
  func.func @transform_2(%arg0: i32, %arg1: i32) -> (i32, i32) {
    %c0_i32 = arith.constant 0 : i32
    %c0_i32_0 = arith.constant 0 : i32
    %c0_i32_1 = arith.constant 0 : i32
    return %c0_i32, %c0_i32_0 : i32, i32
  }
  func.func @transform_3(%arg0: i32, %arg1: i32) -> (i32, i32) {
    %c0_i32 = arith.constant 0 : i32
    %c0_i32_0 = arith.constant 0 : i32
    %c0_i32_1 = arith.constant 0 : i32
    return %c0_i32, %c0_i32_0 : i32, i32
  }
  func.func @transform_4(%arg0: i32, %arg1: i32) -> (i32, i32) {
    %c0_i32 = arith.constant 0 : i32
    %c0_i32_0 = arith.constant 0 : i32
    %c0_i32_1 = arith.constant 0 : i32
    return %c0_i32, %c0_i32_0 : i32, i32
  }
  func.func @transform_5(%arg0: i32, %arg1: i32) -> (i32, i32) {
    %c0_i32 = arith.constant 0 : i32
    %c0_i32_0 = arith.constant 0 : i32
    %c0_i32_1 = arith.constant 0 : i32
    return %c0_i32, %c0_i32_0 : i32, i32
  }
  func.func @transform_6(%arg0: i32, %arg1: i32) -> (i32, i32) {
    %c0_i32 = arith.constant 0 : i32
    %c0_i32_0 = arith.constant 0 : i32
    %c0_i32_1 = arith.constant 0 : i32
    return %c0_i32, %c0_i32_0 : i32, i32
  }
  func.func @transform_7(%arg0: i32, %arg1: i32) -> (i32, i32) {
    %c0_i32 = arith.constant 0 : i32
    %c0_i32_0 = arith.constant 0 : i32
    %c0_i32_1 = arith.constant 0 : i32
    return %c0_i32, %c0_i32_0 : i32, i32
  }
  func.func @transform_8(%arg0: i32, %arg1: i32) -> (i32, i32) {
    %c0_i32 = arith.constant 0 : i32
    %c0_i32_0 = arith.constant 0 : i32
    %c0_i32_1 = arith.constant 0 : i32
    return %c0_i32, %c0_i32_0 : i32, i32
  }
  func.func @transform_9(%arg0: i32, %arg1: i32) -> (i32, i32) {
    %c0_i32 = arith.constant 0 : i32
    %c0_i32_0 = arith.constant 0 : i32
    return %arg0, %c0_i32 : i32, i32
  }
  func.func @transform_10(%arg0: i32, %arg1: i32) -> (i32, i32) {
    %c0_i32 = arith.constant 0 : i32
    %c0_i32_0 = arith.constant 0 : i32
    return %arg0, %c0_i32 : i32, i32
  }
}

</mosaic_0001>

<llo_original>
// kernel: simple_ensemble_forward.1
$region0: #{simple_ensemble_forward.1}
  #allocation0 [shape = 'u32[]', space=smem, size = 0x4, offset = 0x4, fixed_abs, tag = 'smem constant byte address 0x4 - core index']
  #allocation1 [shape = 'u32[72,128]{1,0:T(1,128)}', space=vmem, size = 0x9000, scoped, tag = 'internal scratch']
  #allocation2 [shape = 'f32[8,128]{1,0:T(8,128)}', space=vmem, size = 0x1000, scoped, tag = 'scratch operand']
  %s0 = inlined_call_operand.vmem [shape: f32[2,1024], index: 0, kind: input, shape index: {}]
  %s1 = inlined_call_operand.vmem [shape: f32[4,1280], index: 1, kind: input, shape index: {}]
  %s2 = inlined_call_operand.vmem [shape: f32[1,1280], index: 2, kind: input, shape index: {}]
  %s3 = inlined_call_operand.vmem [shape: bf16[1280,384], index: 3, kind: input, shape index: {}]
  %s4 = inlined_call_operand.vmem [shape: f32[1,384], index: 4, kind: input, shape index: {}]
  %s5 = inlined_call_operand.vmem [shape: bf16[384,256], index: 5, kind: input, shape index: {}]
  %s6 = inlined_call_operand.vmem [shape: f32[1,256], index: 6, kind: input, shape index: {}]
  %s7 = inlined_call_operand.vmem [shape: bf16[256,128], index: 7, kind: input, shape index: {}]
  %s8 = inlined_call_operand.vmem [shape: f32[1,128], index: 8, kind: input, shape index: {}]
  %s9 = inlined_call_operand.vmem [shape: f32[8,1280], index: 9, kind: output, shape index: {0}]
  %s10 = inlined_call_operand.vmem [shape: f32[8,128], index: 10, kind: output, shape index: {1}]
  %11 = xla_tuple %s9, %s10
  %s12 = sld [smem:[#allocation0]]
  $region62: #{simple_ensemble_forward.1} parent=0
    _
  %s14 = ssub.s32 1, %s12
  %s15 = scalar_select 0, %s14, %s12
  // Predicated region
  $region2: #{simple_ensemble_forward.1} parent=0 // pred_check
    _
  $region3: #{simple_ensemble_forward.1} parent=0 // pred_check_branch
    %17 = sbr.rel (0) target = $region5
  $region4: #{simple_ensemble_forward.1} parent=0 // pred_region
    _
  $region5: #{simple_ensemble_forward.1} parent=0 // pred_fallthru
    _
  // Predicated region
  $region6: #{simple_ensemble_forward.1} parent=0 // pred_check
    _
  $region7: #{simple_ensemble_forward.1} parent=0 // pred_check_branch
    %19 = sbr.rel (0) target = $region9
  $region8: #{simple_ensemble_forward.1} parent=0 // pred_region
    _
  $region9: #{simple_ensemble_forward.1} parent=0 // pred_fallthru
    _
  // Predicated region
  $region10: #{simple_ensemble_forward.1} parent=0 // pred_check
    _
  $region11: #{simple_ensemble_forward.1} parent=0 // pred_check_branch
    %21 = sbr.rel (0) target = $region13
  $region12: #{simple_ensemble_forward.1} parent=0 // pred_region
    _
  $region13: #{simple_ensemble_forward.1} parent=0 // pred_fallthru
    _
  // Predicated region
  $region14: #{simple_ensemble_forward.1} parent=0 // pred_check
    _
  $region15: #{simple_ensemble_forward.1} parent=0 // pred_check_branch
    %23 = sbr.rel (0) target = $region17
  $region16: #{simple_ensemble_forward.1} parent=0 // pred_region
    _
  $region17: #{simple_ensemble_forward.1} parent=0 // pred_fallthru
    _
  // Predicated region
  $region18: #{simple_ensemble_forward.1} parent=0 // pred_check
    _
  $region19: #{simple_ensemble_forward.1} parent=0 // pred_check_branch
    %25 = sbr.rel (0) target = $region21
  $region20: #{simple_ensemble_forward.1} parent=0 // pred_region
    _
  $region21: #{simple_ensemble_forward.1} parent=0 // pred_fallthru
    _
  // Predicated region
  $region22: #{simple_ensemble_forward.1} parent=0 // pred_check
    _
  $region23: #{simple_ensemble_forward.1} parent=0 // pred_check_branch
    %27 = sbr.rel (0) target = $region25
  $region24: #{simple_ensemble_forward.1} parent=0 // pred_region
    _
  $region25: #{simple_ensemble_forward.1} parent=0 // pred_fallthru
    _
  // Predicated region
  $region26: #{simple_ensemble_forward.1} parent=0 // pred_check
    _
  $region27: #{simple_ensemble_forward.1} parent=0 // pred_check_branch
    %29 = sbr.rel (0) target = $region29
  $region28: #{simple_ensemble_forward.1} parent=0 // pred_region
    _
  $region29: #{simple_ensemble_forward.1} parent=0 // pred_fallthru
    _
  // Predicated region
  $region30: #{simple_ensemble_forward.1} parent=0 // pred_check
    _
  $region31: #{simple_ensemble_forward.1} parent=0 // pred_check_branch
    %31 = sbr.rel (0) target = $region33
  $region32: #{simple_ensemble_forward.1} parent=0 // pred_region
    _
  $region33: #{simple_ensemble_forward.1} parent=0 // pred_fallthru
    _
  // Predicated region
  $region34: #{simple_ensemble_forward.1} parent=0 // pred_check
    _
  $region35: #{simple_ensemble_forward.1} parent=0 // pred_check_branch
    %33 = sbr.rel (0) target = $region37
  $region36: #{simple_ensemble_forward.1} parent=0 // pred_region
    _
  $region37: #{simple_ensemble_forward.1} parent=0 // pred_fallthru
    _
  %p34 = scmp.eq.s32.totalorder 0, 0
  // Predicated region
  $region38: #{simple_ensemble_forward.1} parent=0 // pred_check
    %p35 = pneg %p34
  $region39: #{simple_ensemble_forward.1} parent=0 // pred_check_branch
    %37 = sbr.rel (%p35) target = $region41
  $region40: #{simple_ensemble_forward.1} parent=0 // pred_region
    %38 = vst [vmem:[#allocation2] sm:$0xff] 0.0
  $region41: #{simple_ensemble_forward.1} parent=0 // pred_fallthru
    _
  %v39 = vlaneseq
  %v40 = vand.u32 %v39, 127
  %v41 = vld [vmem:[%s0] sm:$0xff]
  %v42 = vld [vmem:[%s0 + $0x8] sm:$0xff]
  %v43 = vld [vmem:[%s0 + $0x10] sm:$0xff]
  %v44 = vld [vmem:[%s0 + $0x18] sm:$0xff]
  %v45 = vld [vmem:[%s0 + $0x20] sm:$0xff]
  %v46 = vld [vmem:[%s0 + $0x28] sm:$0xff]
  %v47 = vld [vmem:[%s0 + $0x30] sm:$0xff]
  %v48 = vld [vmem:[%s0 + $0x38] sm:$0xff]
  %53 = vst [vmem:[#allocation1] ss:$4 sm:$0xff] %v41
  %s54 = scalar_lea.vmem [#allocation1], 1
  %55 = vst [vmem:[%s54] ss:$4 sm:$0xff] %v43
  %s56 = scalar_lea.vmem [#allocation1], 2
  %57 = vst [vmem:[%s56] ss:$4 sm:$0xff] %v45
  %s58 = scalar_lea.vmem [#allocation1], 3
  %59 = vst [vmem:[%s58] ss:$4 sm:$0xff] %v47
  %v60 = vld.sshfl [vmem:[#allocation1] sm:$0xff pattern:$0x73625140]
  %v61 = vld.sshfl [vmem:[#allocation1 + $0x8] sm:$0xff pattern:$0x73625140]
  %v64 = vadd.f32 %v60, %v61
  %65 = vadd.xlane.f32.xlu0 %v64
  %v66 = vpop.xlane.xlu0 %65
  %vm67 = vcmp.eq.s32.totalorder %v40, 0
  %v68 = vsel %vm67, %v66, 0.0
  %69 = vst [vmem:[#allocation1] ss:$4 sm:$0xff] %v41
  %s70 = scalar_lea.vmem [#allocation1], 1
  %71 = vst [vmem:[%s70] ss:$4 sm:$0xff] %v43
  %s72 = scalar_lea.vmem [#allocation1], 2
  %73 = vst [vmem:[%s72] ss:$4 sm:$0xff] %v45
  %s74 = scalar_lea.vmem [#allocation1], 3
  %75 = vst [vmem:[%s74] ss:$4 sm:$0xff] %v47
  %v76 = vld.sshfl [vmem:[#allocation1 + $0x10] sm:$0xff pattern:$0x73625140]
  %v77 = vld.sshfl [vmem:[#allocation1 + $0x18] sm:$0xff pattern:$0x73625140]
  %v80 = vadd.f32 %v76, %v77
  %81 = vadd.xlane.f32.xlu0 %v80
  %v82 = vpop.xlane.xlu0 %81
  %vm83 = vcmp.eq.s32.totalorder %v40, 1
  %v84 = vsel %vm83, %v82, %v68
  %89 = vst [vmem:[#allocation1] ss:$4 sm:$0xff] %v42
  %s90 = scalar_lea.vmem [#allocation1], 1
  %91 = vst [vmem:[%s90] ss:$4 sm:$0xff] %v44
  %s92 = scalar_lea.vmem [#allocation1], 2
  %93 = vst [vmem:[%s92] ss:$4 sm:$0xff] %v46
  %s94 = scalar_lea.vmem [#allocation1], 3
  %95 = vst [vmem:[%s94] ss:$4 sm:$0xff] %v48
  %v96 = vld.sshfl [vmem:[#allocation1] sm:$0xff pattern:$0x73625140]
  %v97 = vld.sshfl [vmem:[#allocation1 + $0x8] sm:$0xff pattern:$0x73625140]
  %v100 = vadd.f32 %v96, %v97
  %101 = vadd.xlane.f32.xlu0 %v100
  %v102 = vpop.xlane.xlu0 %101
  %vm103 = vcmp.eq.s32.totalorder %v40, 2
  %v104 = vsel %vm103, %v102, %v84
  %105 = vst [vmem:[#allocation1] ss:$4 sm:$0xff] %v42
  %s106 = scalar_lea.vmem [#allocation1], 1
  %107 = vst [vmem:[%s106] ss:$4 sm:$0xff] %v44
  %s108 = scalar_lea.vmem [#allocation1], 2
  %109 = vst [vmem:[%s108] ss:$4 sm:$0xff] %v46
  %s110 = scalar_lea.vmem [#allocation1], 3
  %111 = vst [vmem:[%s110] ss:$4 sm:$0xff] %v48
  %v112 = vld.sshfl [vmem:[#allocation1 + $0x10] sm:$0xff pattern:$0x73625140]
  %v113 = vld.sshfl [vmem:[#allocation1 + $0x18] sm:$0xff pattern:$0x73625140]
  %v116 = vadd.f32 %v112, %v113
  %117 = vadd.xlane.f32.xlu0 %v116
  %v118 = vpop.xlane.xlu0 %117
  %vm119 = vcmp.eq.s32.totalorder %v40, 3
  %v120 = vsel %vm119, %v118, %v104
  %v121 = vld [vmem:[#allocation2] sm:$0xff]
  %v122 = vadd.f32 %v121, %v120
  %123 = vst [vmem:[#allocation2] sm:$0xff] %v122
  // Predicated region
  $region42: #{simple_ensemble_forward.1} parent=0 // pred_check
    %p124 = pneg %p34
  $region43: #{simple_ensemble_forward.1} parent=0 // pred_check_branch
    %126 = sbr.rel (%p124) target = $region45
  $region44: #{simple_ensemble_forward.1} parent=0 // pred_region
    %v127 = vld [vmem:[#allocation2] sm:$0xff]
    %v128 = vld [vmem:[%s1] ss:$4 sm:$0xff]
    %s129 = scalar_lea.vmem %s1, 32
    %v130 = vld [vmem:[%s129] ss:$4 sm:$0x3]
    %132 = vset.pattern.permute.xlu0 0
    %133 = vperm.xlu0 %132, %v127
    %v134 = vpop.permute.xlu0 %133
    %v138 = vperm.slane %v128, 0
    %v139 = vperm.slane %v128, 1
    %v140 = vperm.slane %v128, 2
    %v141 = vperm.slane %v128, 3
    %v142 = vperm.slane %v128, 4
    %v143 = vperm.slane %v128, 5
    %v144 = vperm.slane %v128, 6
    %v145 = vperm.slane %v128, 7
    %v146 = vperm.slane %v130, 0
    %v147 = vperm.slane %v130, 1
    %v158 = vmul.f32 %v134, %v138
    %v159 = vmul.f32 %v134, %v139
    %v160 = vmul.f32 %v134, %v140
    %v161 = vmul.f32 %v134, %v141
    %v162 = vmul.f32 %v134, %v142
    %v163 = vmul.f32 %v134, %v143
    %v164 = vmul.f32 %v134, %v144
    %v165 = vmul.f32 %v134, %v145
    %v166 = vmul.f32 %v134, %v146
    %v167 = vmul.f32 %v134, %v147
    %s168 = scalar_lea.vmem %s1, 1
    %v169 = vld [vmem:[%s168] ss:$4 sm:$0xff]
    %s170 = scalar_lea.vmem %s1, 33
    %v171 = vld [vmem:[%s170] ss:$4 sm:$0x3]
    %172 = vset.pattern.permute.xlu0 1
    %173 = vperm.xlu0 %172, %v127
    %v174 = vpop.permute.xlu0 %173
    %v178 = vperm.slane %v169, 0
    %v179 = vperm.slane %v169, 1
    %v180 = vperm.slane %v169, 2
    %v181 = vperm.slane %v169, 3
    %v182 = vperm.slane %v169, 4
    %v183 = vperm.slane %v169, 5
    %v184 = vperm.slane %v169, 6
    %v185 = vperm.slane %v169, 7
    %v186 = vperm.slane %v171, 0
    %v187 = vperm.slane %v171, 1
    %v198 = vmul.f32 %v174, %v178
    %v199 = vmul.f32 %v174, %v179
    %v200 = vmul.f32 %v174, %v180
    %v201 = vmul.f32 %v174, %v181
    %v202 = vmul.f32 %v174, %v182
    %v203 = vmul.f32 %v174, %v183
    %v204 = vmul.f32 %v174, %v184
    %v205 = vmul.f32 %v174, %v185
    %v206 = vmul.f32 %v174, %v186
    %v207 = vmul.f32 %v174, %v187
    %v208 = vadd.f32 %v158, %v198
    %v209 = vadd.f32 %v159, %v199
    %v210 = vadd.f32 %v160, %v200
    %v211 = vadd.f32 %v161, %v201
    %v212 = vadd.f32 %v162, %v202
    %v213 = vadd.f32 %v163, %v203
    %v214 = vadd.f32 %v164, %v204
    %v215 = vadd.f32 %v165, %v205
    %v216 = vadd.f32 %v166, %v206
    %v217 = vadd.f32 %v167, %v207
    %s218 = scalar_lea.vmem %s1, 2
    %v219 = vld [vmem:[%s218] ss:$4 sm:$0xff]
    %s220 = scalar_lea.vmem %s1, 34
    %v221 = vld [vmem:[%s220] ss:$4 sm:$0x3]
    %222 = vset.pattern.permute.xlu0 2
    %223 = vperm.xlu0 %222, %v127
    %v224 = vpop.permute.xlu0 %223
    %v228 = vperm.slane %v219, 0
    %v229 = vperm.slane %v219, 1
    %v230 = vperm.slane %v219, 2
    %v231 = vperm.slane %v219, 3
    %v232 = vperm.slane %v219, 4
    %v233 = vperm.slane %v219, 5
    %v234 = vperm.slane %v219, 6
    %v235 = vperm.slane %v219, 7
    %v236 = vperm.slane %v221, 0
    %v237 = vperm.slane %v221, 1
    %v248 = vmul.f32 %v224, %v228
    %v249 = vmul.f32 %v224, %v229
    %v250 = vmul.f32 %v224, %v230
    %v251 = vmul.f32 %v224, %v231
    %v252 = vmul.f32 %v224, %v232
    %v253 = vmul.f32 %v224, %v233
    %v254 = vmul.f32 %v224, %v234
    %v255 = vmul.f32 %v224, %v235
    %v256 = vmul.f32 %v224, %v236
    %v257 = vmul.f32 %v224, %v237
    %v258 = vadd.f32 %v208, %v248
    %v259 = vadd.f32 %v209, %v249
    %v260 = vadd.f32 %v210, %v250
    %v261 = vadd.f32 %v211, %v251
    %v262 = vadd.f32 %v212, %v252
    %v263 = vadd.f32 %v213, %v253
    %v264 = vadd.f32 %v214, %v254
    %v265 = vadd.f32 %v215, %v255
    %v266 = vadd.f32 %v216, %v256
    %v267 = vadd.f32 %v217, %v257
    %s268 = scalar_lea.vmem %s1, 3
    %v269 = vld [vmem:[%s268] ss:$4 sm:$0xff]
    %s270 = scalar_lea.vmem %s1, 35
    %v271 = vld [vmem:[%s270] ss:$4 sm:$0x3]
    %272 = vset.pattern.permute.xlu0 3
    %273 = vperm.xlu0 %272, %v127
    %v274 = vpop.permute.xlu0 %273
    %v278 = vperm.slane %v269, 0
    %v279 = vperm.slane %v269, 1
    %v280 = vperm.slane %v269, 2
    %v281 = vperm.slane %v269, 3
    %v282 = vperm.slane %v269, 4
    %v283 = vperm.slane %v269, 5
    %v284 = vperm.slane %v269, 6
    %v285 = vperm.slane %v269, 7
    %v286 = vperm.slane %v271, 0
    %v287 = vperm.slane %v271, 1
    %v298 = vmul.f32 %v274, %v278
    %v299 = vmul.f32 %v274, %v279
    %v300 = vmul.f32 %v274, %v280
    %v301 = vmul.f32 %v274, %v281
    %v302 = vmul.f32 %v274, %v282
    %v303 = vmul.f32 %v274, %v283
    %v304 = vmul.f32 %v274, %v284
    %v305 = vmul.f32 %v274, %v285
    %v306 = vmul.f32 %v274, %v286
    %v307 = vmul.f32 %v274, %v287
    %v308 = vadd.f32 %v258, %v298
    %v309 = vadd.f32 %v259, %v299
    %v310 = vadd.f32 %v260, %v300
    %v311 = vadd.f32 %v261, %v301
    %v312 = vadd.f32 %v262, %v302
    %v313 = vadd.f32 %v263, %v303
    %v314 = vadd.f32 %v264, %v304
    %v315 = vadd.f32 %v265, %v305
    %v316 = vadd.f32 %v266, %v306
    %v317 = vadd.f32 %v267, %v307
    %v318 = vld [vmem:[%s2] sm:$0xff]
    %v319 = vld [vmem:[%s2 + $0x8] sm:$0x3]
    %v322 = vperm.slane %v318, 0
    %v323 = vperm.slane %v318, 1
    %v324 = vperm.slane %v318, 2
    %v325 = vperm.slane %v318, 3
    %v326 = vperm.slane %v318, 4
    %v327 = vperm.slane %v318, 5
    %v328 = vperm.slane %v318, 6
    %v329 = vperm.slane %v318, 7
    %v330 = vperm.slane %v319, 0
    %v331 = vperm.slane %v319, 1
    %v342 = vadd.f32 %v308, %v322
    %v343 = vadd.f32 %v309, %v323
    %v344 = vadd.f32 %v310, %v324
    %v345 = vadd.f32 %v311, %v325
    %v346 = vadd.f32 %v312, %v326
    %v347 = vadd.f32 %v313, %v327
    %v348 = vadd.f32 %v314, %v328
    %v349 = vadd.f32 %v315, %v329
    %v350 = vadd.f32 %v316, %v330
    %v351 = vadd.f32 %v317, %v331
    %352 = vst [vmem:[%s9] sm:$0xff] %v342
    %353 = vst [vmem:[%s9 + $0x8] sm:$0xff] %v343
    %354 = vst [vmem:[%s9 + $0x10] sm:$0xff] %v344
    %355 = vst [vmem:[%s9 + $0x18] sm:$0xff] %v345
    %356 = vst [vmem:[%s9 + $0x20] sm:$0xff] %v346
    %357 = vst [vmem:[%s9 + $0x28] sm:$0xff] %v347
    %358 = vst [vmem:[%s9 + $0x30] sm:$0xff] %v348
    %359 = vst [vmem:[%s9 + $0x38] sm:$0xff] %v349
    %360 = vst [vmem:[%s9 + $0x40] sm:$0xff] %v350
    %361 = vst [vmem:[%s9 + $0x48] sm:$0xff] %v351
    %v362 = vpack.c.bf16 %v342, %v342
    %v363 = vpack.c.bf16 %v343, %v343
    %v364 = vpack.c.bf16 %v344, %v344
    %v365 = vpack.c.bf16 %v345, %v345
    %v366 = vpack.c.bf16 %v346, %v346
    %v367 = vpack.c.bf16 %v347, %v347
    %v368 = vpack.c.bf16 %v348, %v348
    %v369 = vpack.c.bf16 %v349, %v349
    %v370 = vpack.c.bf16 %v350, %v350
    %v371 = vpack.c.bf16 %v351, %v351
    %v372 = vld [vmem:[%s3] sm:$0xff]
    %v373 = vld [vmem:[%s3 + $0x8] sm:$0xf]
    %v374 = vld [vmem:[%s3 + $0xc] sm:$0xff]
    %v375 = vld [vmem:[%s3 + $0x14] sm:$0xf]
    %v376 = vld [vmem:[%s3 + $0x18] sm:$0xff]
    %v377 = vld [vmem:[%s3 + $0x20] sm:$0xf]
    %v378 = vld [vmem:[%s3 + $0x24] sm:$0xff]
    %v379 = vld [vmem:[%s3 + $0x2c] sm:$0xf]
    %v380 = vld [vmem:[%s3 + $0x30] sm:$0xff]
    %v381 = vld [vmem:[%s3 + $0x38] sm:$0xf]
    %v382 = vld [vmem:[%s3 + $0x3c] sm:$0xff]
    %v383 = vld [vmem:[%s3 + $0x44] sm:$0xf]
    %v384 = vld [vmem:[%s3 + $0x48] sm:$0xff]
    %v385 = vld [vmem:[%s3 + $0x50] sm:$0xf]
    %v386 = vld [vmem:[%s3 + $0x54] sm:$0xff]
    %v387 = vld [vmem:[%s3 + $0x5c] sm:$0xf]
    %v388 = vld [vmem:[%s3 + $0x60] sm:$0xff]
    %v389 = vld [vmem:[%s3 + $0x68] sm:$0xf]
    %v390 = vld [vmem:[%s3 + $0x6c] sm:$0xff]
    %v391 = vld [vmem:[%s3 + $0x74] sm:$0xf]
    %v392 = vld [vmem:[%s3 + $0x78] sm:$0xff]
    %v393 = vld [vmem:[%s3 + $0x80] sm:$0xf]
    %v394 = vld [vmem:[%s3 + $0x84] sm:$0xff]
    %v395 = vld [vmem:[%s3 + $0x8c] sm:$0xf]
    %v396 = vld [vmem:[%s3 + $0x90] sm:$0xff]
    %v397 = vld [vmem:[%s3 + $0x98] sm:$0xf]
    %v398 = vld [vmem:[%s3 + $0x9c] sm:$0xff]
    %v399 = vld [vmem:[%s3 + $0xa4] sm:$0xf]
    %v400 = vld [vmem:[%s3 + $0xa8] sm:$0xff]
    %v401 = vld [vmem:[%s3 + $0xb0] sm:$0xf]
    %v402 = vld [vmem:[%s3 + $0xb4] sm:$0xff]
    %v403 = vld [vmem:[%s3 + $0xbc] sm:$0xf]
    %v404 = vld [vmem:[%s3 + $0xc0] sm:$0xff]
    %v405 = vld [vmem:[%s3 + $0xc8] sm:$0xf]
    %v406 = vld [vmem:[%s3 + $0xcc] sm:$0xff]
    %v407 = vld [vmem:[%s3 + $0xd4] sm:$0xf]
    %v408 = vld [vmem:[%s3 + $0xd8] sm:$0xff]
    %v409 = vld [vmem:[%s3 + $0xe0] sm:$0xf]
    %v410 = vld [vmem:[%s3 + $0xe4] sm:$0xff]
    %v411 = vld [vmem:[%s3 + $0xec] sm:$0xf]
    %v412 = vld [vmem:[%s3 + $0xf0] sm:$0xff]
    %v413 = vld [vmem:[%s3 + $0xf8] sm:$0xf]
    %v414 = vld [vmem:[%s3 + $0xfc] sm:$0xff]
    %v415 = vld [vmem:[%s3 + $0x104] sm:$0xf]
    %v416 = vld [vmem:[%s3 + $0x108] sm:$0xff]
    %v417 = vld [vmem:[%s3 + $0x110] sm:$0xf]
    %v418 = vld [vmem:[%s3 + $0x114] sm:$0xff]
    %v419 = vld [vmem:[%s3 + $0x11c] sm:$0xf]
    %v420 = vld [vmem:[%s3 + $0x120] sm:$0xff]
    %v421 = vld [vmem:[%s3 + $0x128] sm:$0xf]
    %v422 = vld [vmem:[%s3 + $0x12c] sm:$0xff]
    %v423 = vld [vmem:[%s3 + $0x134] sm:$0xf]
    %v424 = vld [vmem:[%s3 + $0x138] sm:$0xff]
    %v425 = vld [vmem:[%s3 + $0x140] sm:$0xf]
    %v426 = vld [vmem:[%s3 + $0x144] sm:$0xff]
    %v427 = vld [vmem:[%s3 + $0x14c] sm:$0xf]
    %v428 = vld [vmem:[%s3 + $0x150] sm:$0xff]
    %v429 = vld [vmem:[%s3 + $0x158] sm:$0xf]
    %v430 = vld [vmem:[%s3 + $0x15c] sm:$0xff]
    %v431 = vld [vmem:[%s3 + $0x164] sm:$0xf]
    %v432 = vld [vmem:[%s3 + $0x168] sm:$0xff]
    %v433 = vld [vmem:[%s3 + $0x170] sm:$0xf]
    %v434 = vld [vmem:[%s3 + $0x174] sm:$0xff]
    %v435 = vld [vmem:[%s3 + $0x17c] sm:$0xf]
    %v436 = vld [vmem:[%s3 + $0x180] sm:$0xff]
    %v437 = vld [vmem:[%s3 + $0x188] sm:$0xf]
    %v438 = vld [vmem:[%s3 + $0x18c] sm:$0xff]
    %v439 = vld [vmem:[%s3 + $0x194] sm:$0xf]
    %v440 = vld [vmem:[%s3 + $0x198] sm:$0xff]
    %v441 = vld [vmem:[%s3 + $0x1a0] sm:$0xf]
    %v442 = vld [vmem:[%s3 + $0x1a4] sm:$0xff]
    %v443 = vld [vmem:[%s3 + $0x1ac] sm:$0xf]
    %v444 = vld [vmem:[%s3 + $0x1b0] sm:$0xff]
    %v445 = vld [vmem:[%s3 + $0x1b8] sm:$0xf]
    %v446 = vld [vmem:[%s3 + $0x1bc] sm:$0xff]
    %v447 = vld [vmem:[%s3 + $0x1c4] sm:$0xf]
    %v448 = vld [vmem:[%s3 + $0x1c8] sm:$0xff]
    %v449 = vld [vmem:[%s3 + $0x1d0] sm:$0xf]
    %v450 = vld [vmem:[%s3 + $0x1d4] sm:$0xff]
    %v451 = vld [vmem:[%s3 + $0x1dc] sm:$0xf]
    %v452 = vld [vmem:[%s3 + $0x1e0] sm:$0xff]
    %v453 = vld [vmem:[%s3 + $0x1e8] sm:$0xf]
    %v454 = vld [vmem:[%s3 + $0x1ec] sm:$0xff]
    %v455 = vld [vmem:[%s3 + $0x1f4] sm:$0xf]
    %v456 = vld [vmem:[%s3 + $0x1f8] sm:$0xff]
    %v457 = vld [vmem:[%s3 + $0x200] sm:$0xf]
    %v458 = vld [vmem:[%s3 + $0x204] sm:$0xff]
    %v459 = vld [vmem:[%s3 + $0x20c] sm:$0xf]
    %v460 = vld [vmem:[%s3 + $0x210] sm:$0xff]
    %v461 = vld [vmem:[%s3 + $0x218] sm:$0xf]
    %v462 = vld [vmem:[%s3 + $0x21c] sm:$0xff]
    %v463 = vld [vmem:[%s3 + $0x224] sm:$0xf]
    %v464 = vld [vmem:[%s3 + $0x228] sm:$0xff]
    %v465 = vld [vmem:[%s3 + $0x230] sm:$0xf]
    %v466 = vld [vmem:[%s3 + $0x234] sm:$0xff]
    %v467 = vld [vmem:[%s3 + $0x23c] sm:$0xf]
    %v468 = vld [vmem:[%s3 + $0x240] sm:$0xff]
    %v469 = vld [vmem:[%s3 + $0x248] sm:$0xf]
    %v470 = vld [vmem:[%s3 + $0x24c] sm:$0xff]
    %v471 = vld [vmem:[%s3 + $0x254] sm:$0xf]
    %v472 = vld [vmem:[%s3 + $0x258] sm:$0xff]
    %v473 = vld [vmem:[%s3 + $0x260] sm:$0xf]
    %v474 = vld [vmem:[%s3 + $0x264] sm:$0xff]
    %v475 = vld [vmem:[%s3 + $0x26c] sm:$0xf]
    %v476 = vld [vmem:[%s3 + $0x270] sm:$0xff]
    %v477 = vld [vmem:[%s3 + $0x278] sm:$0xf]
    %v478 = vld [vmem:[%s3 + $0x27c] sm:$0xff]
    %v479 = vld [vmem:[%s3 + $0x284] sm:$0xf]
    %v480 = vld [vmem:[%s3 + $0x288] sm:$0xff]
    %v481 = vld [vmem:[%s3 + $0x290] sm:$0xf]
    %v482 = vld [vmem:[%s3 + $0x294] sm:$0xff]
    %v483 = vld [vmem:[%s3 + $0x29c] sm:$0xf]
    %v484 = vld [vmem:[%s3 + $0x2a0] sm:$0xff]
    %v485 = vld [vmem:[%s3 + $0x2a8] sm:$0xf]
    %v486 = vld [vmem:[%s3 + $0x2ac] sm:$0xff]
    %v487 = vld [vmem:[%s3 + $0x2b4] sm:$0xf]
    %v488 = vld [vmem:[%s3 + $0x2b8] sm:$0xff]
    %v489 = vld [vmem:[%s3 + $0x2c0] sm:$0xf]
    %v490 = vld [vmem:[%s3 + $0x2c4] sm:$0xff]
    %v491 = vld [vmem:[%s3 + $0x2cc] sm:$0xf]
    %v492 = vld [vmem:[%s3 + $0x2d0] sm:$0xff]
    %v493 = vld [vmem:[%s3 + $0x2d8] sm:$0xf]
    %v494 = vld [vmem:[%s3 + $0x2dc] sm:$0xff]
    %v495 = vld [vmem:[%s3 + $0x2e4] sm:$0xf]
    %v496 = vld [vmem:[%s3 + $0x2e8] sm:$0xff]
    %v497 = vld [vmem:[%s3 + $0x2f0] sm:$0xf]
    %v498 = vld [vmem:[%s3 + $0x2f4] sm:$0xff]
    %v499 = vld [vmem:[%s3 + $0x2fc] sm:$0xf]
    %v500 = vld [vmem:[%s3 + $0x300] sm:$0xff]
    %v501 = vld [vmem:[%s3 + $0x308] sm:$0xf]
    %v502 = vld [vmem:[%s3 + $0x30c] sm:$0xff]
    %v503 = vld [vmem:[%s3 + $0x314] sm:$0xf]
    %v504 = vld [vmem:[%s3 + $0x318] sm:$0xff]
    %v505 = vld [vmem:[%s3 + $0x320] sm:$0xf]
    %v506 = vld [vmem:[%s3 + $0x324] sm:$0xff]
    %v507 = vld [vmem:[%s3 + $0x32c] sm:$0xf]
    %v508 = vld [vmem:[%s3 + $0x330] sm:$0xff]
    %v509 = vld [vmem:[%s3 + $0x338] sm:$0xf]
    %v510 = vld [vmem:[%s3 + $0x33c] sm:$0xff]
    %v511 = vld [vmem:[%s3 + $0x344] sm:$0xf]
    %v512 = vld [vmem:[%s3 + $0x348] sm:$0xff]
    %v513 = vld [vmem:[%s3 + $0x350] sm:$0xf]
    %v514 = vld [vmem:[%s3 + $0x354] sm:$0xff]
    %v515 = vld [vmem:[%s3 + $0x35c] sm:$0xf]
    %v516 = vld [vmem:[%s3 + $0x360] sm:$0xff]
    %v517 = vld [vmem:[%s3 + $0x368] sm:$0xf]
    %v518 = vld [vmem:[%s3 + $0x36c] sm:$0xff]
    %v519 = vld [vmem:[%s3 + $0x374] sm:$0xf]
    %v520 = vld [vmem:[%s3 + $0x378] sm:$0xff]
    %v521 = vld [vmem:[%s3 + $0x380] sm:$0xf]
    %v522 = vld [vmem:[%s3 + $0x384] sm:$0xff]
    %v523 = vld [vmem:[%s3 + $0x38c] sm:$0xf]
    %v524 = vld [vmem:[%s3 + $0x390] sm:$0xff]
    %v525 = vld [vmem:[%s3 + $0x398] sm:$0xf]
    %v526 = vld [vmem:[%s3 + $0x39c] sm:$0xff]
    %v527 = vld [vmem:[%s3 + $0x3a4] sm:$0xf]
    %v528 = vld [vmem:[%s3 + $0x3a8] sm:$0xff]
    %v529 = vld [vmem:[%s3 + $0x3b0] sm:$0xf]
    %v530 = vld [vmem:[%s3 + $0x3b4] sm:$0xff]
    %v531 = vld [vmem:[%s3 + $0x3bc] sm:$0xf]
    %v532 = vld [vmem:[%s3 + $0x3c0] sm:$0xff]
    %v533 = vld [vmem:[%s3 + $0x3c8] sm:$0xf]
    %v534 = vld [vmem:[%s3 + $0x3cc] sm:$0xff]
    %v535 = vld [vmem:[%s3 + $0x3d4] sm:$0xf]
    %v536 = vld [vmem:[%s3 + $0x3d8] sm:$0xff]
    %v537 = vld [vmem:[%s3 + $0x3e0] sm:$0xf]
    %v538 = vld [vmem:[%s3 + $0x3e4] sm:$0xff]
    %v539 = vld [vmem:[%s3 + $0x3ec] sm:$0xf]
    %v540 = vld [vmem:[%s3 + $0x3f0] sm:$0xff]
    %v541 = vld [vmem:[%s3 + $0x3f8] sm:$0xf]
    %v542 = vld [vmem:[%s3 + $0x3fc] sm:$0xff]
    %v543 = vld [vmem:[%s3 + $0x404] sm:$0xf]
    %v544 = vld [vmem:[%s3 + $0x408] sm:$0xff]
    %v545 = vld [vmem:[%s3 + $0x410] sm:$0xf]
    %v546 = vld [vmem:[%s3 + $0x414] sm:$0xff]
    %v547 = vld [vmem:[%s3 + $0x41c] sm:$0xf]
    %v548 = vld [vmem:[%s3 + $0x420] sm:$0xff]
    %v549 = vld [vmem:[%s3 + $0x428] sm:$0xf]
    %v550 = vld [vmem:[%s3 + $0x42c] sm:$0xff]
    %v551 = vld [vmem:[%s3 + $0x434] sm:$0xf]
    %v552 = vld [vmem:[%s3 + $0x438] sm:$0xff]
    %v553 = vld [vmem:[%s3 + $0x440] sm:$0xf]
    %v554 = vld [vmem:[%s3 + $0x444] sm:$0xff]
    %v555 = vld [vmem:[%s3 + $0x44c] sm:$0xf]
    %v556 = vld [vmem:[%s3 + $0x450] sm:$0xff]
    %v557 = vld [vmem:[%s3 + $0x458] sm:$0xf]
    %v558 = vld [vmem:[%s3 + $0x45c] sm:$0xff]
    %v559 = vld [vmem:[%s3 + $0x464] sm:$0xf]
    %v560 = vld [vmem:[%s3 + $0x468] sm:$0xff]
    %v561 = vld [vmem:[%s3 + $0x470] sm:$0xf]
    %v562 = vld [vmem:[%s3 + $0x474] sm:$0xff]
    %v563 = vld [vmem:[%s3 + $0x47c] sm:$0xf]
    %v564 = vld [vmem:[%s3 + $0x480] sm:$0xff]
    %v565 = vld [vmem:[%s3 + $0x488] sm:$0xf]
    %v566 = vld [vmem:[%s3 + $0x48c] sm:$0xff]
    %v567 = vld [vmem:[%s3 + $0x494] sm:$0xf]
    %v568 = vld [vmem:[%s3 + $0x498] sm:$0xff]
    %v569 = vld [vmem:[%s3 + $0x4a0] sm:$0xf]
    %v570 = vld [vmem:[%s3 + $0x4a4] sm:$0xff]
    %v571 = vld [vmem:[%s3 + $0x4ac] sm:$0xf]
    %v572 = vld [vmem:[%s3 + $0x4b0] sm:$0xff]
    %v573 = vld [vmem:[%s3 + $0x4b8] sm:$0xf]
    %v574 = vld [vmem:[%s3 + $0x4bc] sm:$0xff]
    %v575 = vld [vmem:[%s3 + $0x4c4] sm:$0xf]
    %v576 = vld [vmem:[%s3 + $0x4c8] sm:$0xff]
    %v577 = vld [vmem:[%s3 + $0x4d0] sm:$0xf]
    %v578 = vld [vmem:[%s3 + $0x4d4] sm:$0xff]
    %v579 = vld [vmem:[%s3 + $0x4dc] sm:$0xf]
    %v580 = vld [vmem:[%s3 + $0x4e0] sm:$0xff]
    %v581 = vld [vmem:[%s3 + $0x4e8] sm:$0xf]
    %v582 = vld [vmem:[%s3 + $0x4ec] sm:$0xff]
    %v583 = vld [vmem:[%s3 + $0x4f4] sm:$0xf]
    %v584 = vld [vmem:[%s3 + $0x4f8] sm:$0xff]
    %v585 = vld [vmem:[%s3 + $0x500] sm:$0xf]
    %v586 = vld [vmem:[%s3 + $0x504] sm:$0xff]
    %v587 = vld [vmem:[%s3 + $0x50c] sm:$0xf]
    %v588 = vld [vmem:[%s3 + $0x510] sm:$0xff]
    %v589 = vld [vmem:[%s3 + $0x518] sm:$0xf]
    %v590 = vld [vmem:[%s3 + $0x51c] sm:$0xff]
    %v591 = vld [vmem:[%s3 + $0x524] sm:$0xf]
    %v592 = vld [vmem:[%s3 + $0x528] sm:$0xff]
    %v593 = vld [vmem:[%s3 + $0x530] sm:$0xf]
    %v594 = vld [vmem:[%s3 + $0x534] sm:$0xff]
    %v595 = vld [vmem:[%s3 + $0x53c] sm:$0xf]
    %v596 = vld [vmem:[%s3 + $0x540] sm:$0xff]
    %v597 = vld [vmem:[%s3 + $0x548] sm:$0xf]
    %v598 = vld [vmem:[%s3 + $0x54c] sm:$0xff]
    %v599 = vld [vmem:[%s3 + $0x554] sm:$0xf]
    %v600 = vld [vmem:[%s3 + $0x558] sm:$0xff]
    %v601 = vld [vmem:[%s3 + $0x560] sm:$0xf]
    %v602 = vld [vmem:[%s3 + $0x564] sm:$0xff]
    %v603 = vld [vmem:[%s3 + $0x56c] sm:$0xf]
    %v604 = vld [vmem:[%s3 + $0x570] sm:$0xff]
    %v605 = vld [vmem:[%s3 + $0x578] sm:$0xf]
    %v606 = vld [vmem:[%s3 + $0x57c] sm:$0xff]
    %v607 = vld [vmem:[%s3 + $0x584] sm:$0xf]
    %v608 = vld [vmem:[%s3 + $0x588] sm:$0xff]
    %v609 = vld [vmem:[%s3 + $0x590] sm:$0xf]
    %v610 = vld [vmem:[%s3 + $0x594] sm:$0xff]
    %v611 = vld [vmem:[%s3 + $0x59c] sm:$0xf]
    %v612 = vld [vmem:[%s3 + $0x5a0] sm:$0xff]
    %v613 = vld [vmem:[%s3 + $0x5a8] sm:$0xf]
    %v614 = vld [vmem:[%s3 + $0x5ac] sm:$0xff]
    %v615 = vld [vmem:[%s3 + $0x5b4] sm:$0xf]
    %v616 = vld [vmem:[%s3 + $0x5b8] sm:$0xff]
    %v617 = vld [vmem:[%s3 + $0x5c0] sm:$0xf]
    %v618 = vld [vmem:[%s3 + $0x5c4] sm:$0xff]
    %v619 = vld [vmem:[%s3 + $0x5cc] sm:$0xf]
    %v620 = vld [vmem:[%s3 + $0x5d0] sm:$0xff]
    %v621 = vld [vmem:[%s3 + $0x5d8] sm:$0xf]
    %v622 = vld [vmem:[%s3 + $0x5dc] sm:$0xff]
    %v623 = vld [vmem:[%s3 + $0x5e4] sm:$0xf]
    %v624 = vld [vmem:[%s3 + $0x5e8] sm:$0xff]
    %v625 = vld [vmem:[%s3 + $0x5f0] sm:$0xf]
    %v626 = vld [vmem:[%s3 + $0x5f4] sm:$0xff]
    %v627 = vld [vmem:[%s3 + $0x5fc] sm:$0xf]
    %v628 = vld [vmem:[%s3 + $0x600] sm:$0xff]
    %v629 = vld [vmem:[%s3 + $0x608] sm:$0xf]
    %v630 = vld [vmem:[%s3 + $0x60c] sm:$0xff]
    %v631 = vld [vmem:[%s3 + $0x614] sm:$0xf]
    %v632 = vld [vmem:[%s3 + $0x618] sm:$0xff]
    %v633 = vld [vmem:[%s3 + $0x620] sm:$0xf]
    %v634 = vld [vmem:[%s3 + $0x624] sm:$0xff]
    %v635 = vld [vmem:[%s3 + $0x62c] sm:$0xf]
    %v636 = vld [vmem:[%s3 + $0x630] sm:$0xff]
    %v637 = vld [vmem:[%s3 + $0x638] sm:$0xf]
    %v638 = vld [vmem:[%s3 + $0x63c] sm:$0xff]
    %v639 = vld [vmem:[%s3 + $0x644] sm:$0xf]
    %v640 = vld [vmem:[%s3 + $0x648] sm:$0xff]
    %v641 = vld [vmem:[%s3 + $0x650] sm:$0xf]
    %v642 = vld [vmem:[%s3 + $0x654] sm:$0xff]
    %v643 = vld [vmem:[%s3 + $0x65c] sm:$0xf]
    %v644 = vld [vmem:[%s3 + $0x660] sm:$0xff]
    %v645 = vld [vmem:[%s3 + $0x668] sm:$0xf]
    %v646 = vld [vmem:[%s3 + $0x66c] sm:$0xff]
    %v647 = vld [vmem:[%s3 + $0x674] sm:$0xf]
    %v648 = vld [vmem:[%s3 + $0x678] sm:$0xff]
    %v649 = vld [vmem:[%s3 + $0x680] sm:$0xf]
    %v650 = vld [vmem:[%s3 + $0x684] sm:$0xff]
    %v651 = vld [vmem:[%s3 + $0x68c] sm:$0xf]
    %v652 = vld [vmem:[%s3 + $0x690] sm:$0xff]
    %v653 = vld [vmem:[%s3 + $0x698] sm:$0xf]
    %v654 = vld [vmem:[%s3 + $0x69c] sm:$0xff]
    %v655 = vld [vmem:[%s3 + $0x6a4] sm:$0xf]
    %v656 = vld [vmem:[%s3 + $0x6a8] sm:$0xff]
    %v657 = vld [vmem:[%s3 + $0x6b0] sm:$0xf]
    %v658 = vld [vmem:[%s3 + $0x6b4] sm:$0xff]
    %v659 = vld [vmem:[%s3 + $0x6bc] sm:$0xf]
    %v660 = vld [vmem:[%s3 + $0x6c0] sm:$0xff]
    %v661 = vld [vmem:[%s3 + $0x6c8] sm:$0xf]
    %v662 = vld [vmem:[%s3 + $0x6cc] sm:$0xff]
    %v663 = vld [vmem:[%s3 + $0x6d4] sm:$0xf]
    %v664 = vld [vmem:[%s3 + $0x6d8] sm:$0xff]
    %v665 = vld [vmem:[%s3 + $0x6e0] sm:$0xf]
    %v666 = vld [vmem:[%s3 + $0x6e4] sm:$0xff]
    %v667 = vld [vmem:[%s3 + $0x6ec] sm:$0xf]
    %v668 = vld [vmem:[%s3 + $0x6f0] sm:$0xff]
    %v669 = vld [vmem:[%s3 + $0x6f8] sm:$0xf]
    %v670 = vld [vmem:[%s3 + $0x6fc] sm:$0xff]
    %v671 = vld [vmem:[%s3 + $0x704] sm:$0xf]
    %v672 = vld [vmem:[%s3 + $0x708] sm:$0xff]
    %v673 = vld [vmem:[%s3 + $0x710] sm:$0xf]
    %v674 = vld [vmem:[%s3 + $0x714] sm:$0xff]
    %v675 = vld [vmem:[%s3 + $0x71c] sm:$0xf]
    %v676 = vld [vmem:[%s3 + $0x720] sm:$0xff]
    %v677 = vld [vmem:[%s3 + $0x728] sm:$0xf]
    %v678 = vld [vmem:[%s3 + $0x72c] sm:$0xff]
    %v679 = vld [vmem:[%s3 + $0x734] sm:$0xf]
    %v680 = vld [vmem:[%s3 + $0x738] sm:$0xff]
    %v681 = vld [vmem:[%s3 + $0x740] sm:$0xf]
    %v682 = vld [vmem:[%s3 + $0x744] sm:$0xff]
    %v683 = vld [vmem:[%s3 + $0x74c] sm:$0xf]
    %v684 = vld [vmem:[%s3 + $0x750] sm:$0xff]
    %v685 = vld [vmem:[%s3 + $0x758] sm:$0xf]
    %v686 = vld [vmem:[%s3 + $0x75c] sm:$0xff]
    %v687 = vld [vmem:[%s3 + $0x764] sm:$0xf]
    %v688 = vld [vmem:[%s3 + $0x768] sm:$0xff]
    %v689 = vld [vmem:[%s3 + $0x770] sm:$0xf]
    %v690 = vld [vmem:[%s3 + $0x774] sm:$0xff]
    %v691 = vld [vmem:[%s3 + $0x77c] sm:$0xf]
    %v692 = vld [vmem:[%s4] sm:$0x7]
    %v694 = vperm.slane %v692, 0
    %v695 = vperm.slane %v692, 1
    %v696 = vperm.slane %v692, 2
    %v1020 = vunpack.c.l.b16 %v372
    %v1021 = vunpack.c.h.b16 %v372
    %v1022 = vunpack.c.l.b16 %v373
    %v1023 = vunpack.c.l.b16 %v374
    %v1024 = vunpack.c.h.b16 %v374
    %v1025 = vunpack.c.l.b16 %v375
    %v1026 = vunpack.c.l.b16 %v376
    %v1027 = vunpack.c.h.b16 %v376
    %v1028 = vunpack.c.l.b16 %v377
    %v1029 = vunpack.c.l.b16 %v378
    %v1030 = vunpack.c.h.b16 %v378
    %v1031 = vunpack.c.l.b16 %v379
    %v1032 = vunpack.c.l.b16 %v380
    %v1033 = vunpack.c.h.b16 %v380
    %v1034 = vunpack.c.l.b16 %v381
    %v1035 = vunpack.c.l.b16 %v382
    %v1036 = vunpack.c.h.b16 %v382
    %v1037 = vunpack.c.l.b16 %v383
    %v1038 = vunpack.c.l.b16 %v384
    %v1039 = vunpack.c.h.b16 %v384
    %v1040 = vunpack.c.l.b16 %v385
    %v1041 = vunpack.c.l.b16 %v386
    %v1042 = vunpack.c.h.b16 %v386
    %v1043 = vunpack.c.l.b16 %v387
    %v1044 = vunpack.c.l.b16 %v388
    %v1045 = vunpack.c.h.b16 %v388
    %v1046 = vunpack.c.l.b16 %v389
    %v1047 = vunpack.c.l.b16 %v390
    %v1048 = vunpack.c.h.b16 %v390
    %v1049 = vunpack.c.l.b16 %v391
    %v1050 = vunpack.c.l.b16 %v392
    %v1051 = vunpack.c.h.b16 %v392
    %v1052 = vunpack.c.l.b16 %v393
    %v1053 = vunpack.c.l.b16 %v394
    %v1054 = vunpack.c.h.b16 %v394
    %v1055 = vunpack.c.l.b16 %v395
    %v1056 = vunpack.c.l.b16 %v396
    %v1057 = vunpack.c.h.b16 %v396
    %v1058 = vunpack.c.l.b16 %v397
    %v1059 = vunpack.c.l.b16 %v398
    %v1060 = vunpack.c.h.b16 %v398
    %v1061 = vunpack.c.l.b16 %v399
    %v1062 = vunpack.c.l.b16 %v400
    %v1063 = vunpack.c.h.b16 %v400
    %v1064 = vunpack.c.l.b16 %v401
    %v1065 = vunpack.c.l.b16 %v402
    %v1066 = vunpack.c.h.b16 %v402
    %v1067 = vunpack.c.l.b16 %v403
    %v1068 = vunpack.c.l.b16 %v404
    %v1069 = vunpack.c.h.b16 %v404
    %v1070 = vunpack.c.l.b16 %v405
    %v1071 = vunpack.c.l.b16 %v406
    %v1072 = vunpack.c.h.b16 %v406
    %v1073 = vunpack.c.l.b16 %v407
    %v1074 = vunpack.c.l.b16 %v408
    %v1075 = vunpack.c.h.b16 %v408
    %v1076 = vunpack.c.l.b16 %v409
    %v1077 = vunpack.c.l.b16 %v410
    %v1078 = vunpack.c.h.b16 %v410
    %v1079 = vunpack.c.l.b16 %v411
    %v1080 = vunpack.c.l.b16 %v412
    %v1081 = vunpack.c.h.b16 %v412
    %v1082 = vunpack.c.l.b16 %v413
    %v1083 = vunpack.c.l.b16 %v414
    %v1084 = vunpack.c.h.b16 %v414
    %v1085 = vunpack.c.l.b16 %v415
    %v1086 = vunpack.c.l.b16 %v416
    %v1087 = vunpack.c.h.b16 %v416
    %v1088 = vunpack.c.l.b16 %v417
    %v1089 = vunpack.c.l.b16 %v418
    %v1090 = vunpack.c.h.b16 %v418
    %v1091 = vunpack.c.l.b16 %v419
    %v1092 = vunpack.c.l.b16 %v420
    %v1093 = vunpack.c.h.b16 %v420
    %v1094 = vunpack.c.l.b16 %v421
    %v1095 = vunpack.c.l.b16 %v422
    %v1096 = vunpack.c.h.b16 %v422
    %v1097 = vunpack.c.l.b16 %v423
    %v1098 = vunpack.c.l.b16 %v424
    %v1099 = vunpack.c.h.b16 %v424
    %v1100 = vunpack.c.l.b16 %v425
    %v1101 = vunpack.c.l.b16 %v426
    %v1102 = vunpack.c.h.b16 %v426
    %v1103 = vunpack.c.l.b16 %v427
    %v1104 = vunpack.c.l.b16 %v428
    %v1105 = vunpack.c.h.b16 %v428
    %v1106 = vunpack.c.l.b16 %v429
    %v1107 = vunpack.c.l.b16 %v430
    %v1108 = vunpack.c.h.b16 %v430
    %v1109 = vunpack.c.l.b16 %v431
    %v1110 = vunpack.c.l.b16 %v432
    %v1111 = vunpack.c.h.b16 %v432
    %v1112 = vunpack.c.l.b16 %v433
    %v1113 = vunpack.c.l.b16 %v434
    %v1114 = vunpack.c.h.b16 %v434
    %v1115 = vunpack.c.l.b16 %v435
    %v1116 = vunpack.c.l.b16 %v436
    %v1117 = vunpack.c.h.b16 %v436
    %v1118 = vunpack.c.l.b16 %v437
    %v1119 = vunpack.c.l.b16 %v438
    %v1120 = vunpack.c.h.b16 %v438
    %v1121 = vunpack.c.l.b16 %v439
    %v1122 = vunpack.c.l.b16 %v440
    %v1123 = vunpack.c.h.b16 %v440
    %v1124 = vunpack.c.l.b16 %v441
    %v1125 = vunpack.c.l.b16 %v442
    %v1126 = vunpack.c.h.b16 %v442
    %v1127 = vunpack.c.l.b16 %v443
    %v1128 = vunpack.c.l.b16 %v444
    %v1129 = vunpack.c.h.b16 %v444
    %v1130 = vunpack.c.l.b16 %v445
    %v1131 = vunpack.c.l.b16 %v446
    %v1132 = vunpack.c.h.b16 %v446
    %v1133 = vunpack.c.l.b16 %v447
    %v1134 = vunpack.c.l.b16 %v448
    %v1135 = vunpack.c.h.b16 %v448
    %v1136 = vunpack.c.l.b16 %v449
    %v1137 = vunpack.c.l.b16 %v450
    %v1138 = vunpack.c.h.b16 %v450
    %v1139 = vunpack.c.l.b16 %v451
    %v1140 = vunpack.c.l.b16 %v452
    %v1141 = vunpack.c.h.b16 %v452
    %v1142 = vunpack.c.l.b16 %v453
    %v1143 = vunpack.c.l.b16 %v454
    %v1144 = vunpack.c.h.b16 %v454
    %v1145 = vunpack.c.l.b16 %v455
    %v1146 = vunpack.c.l.b16 %v456
    %v1147 = vunpack.c.h.b16 %v456
    %v1148 = vunpack.c.l.b16 %v457
    %v1149 = vunpack.c.l.b16 %v458
    %v1150 = vunpack.c.h.b16 %v458
    %v1151 = vunpack.c.l.b16 %v459
    %v1152 = vunpack.c.l.b16 %v460
    %v1153 = vunpack.c.h.b16 %v460
    %v1154 = vunpack.c.l.b16 %v461
    %v1155 = vunpack.c.l.b16 %v462
    %v1156 = vunpack.c.h.b16 %v462
    %v1157 = vunpack.c.l.b16 %v463
    %v1158 = vunpack.c.l.b16 %v464
    %v1159 = vunpack.c.h.b16 %v464
    %v1160 = vunpack.c.l.b16 %v465
    %v1161 = vunpack.c.l.b16 %v466
    %v1162 = vunpack.c.h.b16 %v466
    %v1163 = vunpack.c.l.b16 %v467
    %v1164 = vunpack.c.l.b16 %v468
    %v1165 = vunpack.c.h.b16 %v468
    %v1166 = vunpack.c.l.b16 %v469
    %v1167 = vunpack.c.l.b16 %v470
    %v1168 = vunpack.c.h.b16 %v470
    %v1169 = vunpack.c.l.b16 %v471
    %v1170 = vunpack.c.l.b16 %v472
    %v1171 = vunpack.c.h.b16 %v472
    %v1172 = vunpack.c.l.b16 %v473
    %v1173 = vunpack.c.l.b16 %v474
    %v1174 = vunpack.c.h.b16 %v474
    %v1175 = vunpack.c.l.b16 %v475
    %v1176 = vunpack.c.l.b16 %v476
    %v1177 = vunpack.c.h.b16 %v476
    %v1178 = vunpack.c.l.b16 %v477
    %v1179 = vunpack.c.l.b16 %v478
    %v1180 = vunpack.c.h.b16 %v478
    %v1181 = vunpack.c.l.b16 %v479
    %v1182 = vunpack.c.l.b16 %v480
    %v1183 = vunpack.c.h.b16 %v480
    %v1184 = vunpack.c.l.b16 %v481
    %v1185 = vunpack.c.l.b16 %v482
    %v1186 = vunpack.c.h.b16 %v482
    %v1187 = vunpack.c.l.b16 %v483
    %v1188 = vunpack.c.l.b16 %v484
    %v1189 = vunpack.c.h.b16 %v484
    %v1190 = vunpack.c.l.b16 %v485
    %v1191 = vunpack.c.l.b16 %v486
    %v1192 = vunpack.c.h.b16 %v486
    %v1193 = vunpack.c.l.b16 %v487
    %v1194 = vunpack.c.l.b16 %v488
    %v1195 = vunpack.c.h.b16 %v488
    %v1196 = vunpack.c.l.b16 %v489
    %v1197 = vunpack.c.l.b16 %v490
    %v1198 = vunpack.c.h.b16 %v490
    %v1199 = vunpack.c.l.b16 %v491
    %v1200 = vunpack.c.l.b16 %v492
    %v1201 = vunpack.c.h.b16 %v492
    %v1202 = vunpack.c.l.b16 %v493
    %v1203 = vunpack.c.l.b16 %v494
    %v1204 = vunpack.c.h.b16 %v494
    %v1205 = vunpack.c.l.b16 %v495
    %v1206 = vunpack.c.l.b16 %v496
    %v1207 = vunpack.c.h.b16 %v496
    %v1208 = vunpack.c.l.b16 %v497
    %v1209 = vunpack.c.l.b16 %v498
    %v1210 = vunpack.c.h.b16 %v498
    %v1211 = vunpack.c.l.b16 %v499
    %v1212 = vunpack.c.l.b16 %v500
    %v1213 = vunpack.c.h.b16 %v500
    %v1214 = vunpack.c.l.b16 %v501
    %v1215 = vunpack.c.l.b16 %v502
    %v1216 = vunpack.c.h.b16 %v502
    %v1217 = vunpack.c.l.b16 %v503
    %v1218 = vunpack.c.l.b16 %v504
    %v1219 = vunpack.c.h.b16 %v504
    %v1220 = vunpack.c.l.b16 %v505
    %v1221 = vunpack.c.l.b16 %v506
    %v1222 = vunpack.c.h.b16 %v506
    %v1223 = vunpack.c.l.b16 %v507
    %v1224 = vunpack.c.l.b16 %v508
    %v1225 = vunpack.c.h.b16 %v508
    %v1226 = vunpack.c.l.b16 %v509
    %v1227 = vunpack.c.l.b16 %v510
    %v1228 = vunpack.c.h.b16 %v510
    %v1229 = vunpack.c.l.b16 %v511
    %v1230 = vunpack.c.l.b16 %v512
    %v1231 = vunpack.c.h.b16 %v512
    %v1232 = vunpack.c.l.b16 %v513
    %v1233 = vunpack.c.l.b16 %v514
    %v1234 = vunpack.c.h.b16 %v514
    %v1235 = vunpack.c.l.b16 %v515
    %v1236 = vunpack.c.l.b16 %v516
    %v1237 = vunpack.c.h.b16 %v516
    %v1238 = vunpack.c.l.b16 %v517
    %v1239 = vunpack.c.l.b16 %v518
    %v1240 = vunpack.c.h.b16 %v518
    %v1241 = vunpack.c.l.b16 %v519
    %v1242 = vunpack.c.l.b16 %v520
    %v1243 = vunpack.c.h.b16 %v520
    %v1244 = vunpack.c.l.b16 %v521
    %v1245 = vunpack.c.l.b16 %v522
    %v1246 = vunpack.c.h.b16 %v522
    %v1247 = vunpack.c.l.b16 %v523
    %v1248 = vunpack.c.l.b16 %v524
    %v1249 = vunpack.c.h.b16 %v524
    %v1250 = vunpack.c.l.b16 %v525
    %v1251 = vunpack.c.l.b16 %v526
    %v1252 = vunpack.c.h.b16 %v526
    %v1253 = vunpack.c.l.b16 %v527
    %v1254 = vunpack.c.l.b16 %v528
    %v1255 = vunpack.c.h.b16 %v528
    %v1256 = vunpack.c.l.b16 %v529
    %v1257 = vunpack.c.l.b16 %v530
    %v1258 = vunpack.c.h.b16 %v530
    %v1259 = vunpack.c.l.b16 %v531
    %v1260 = vunpack.c.l.b16 %v532
    %v1261 = vunpack.c.h.b16 %v532
    %v1262 = vunpack.c.l.b16 %v533
    %v1263 = vunpack.c.l.b16 %v534
    %v1264 = vunpack.c.h.b16 %v534
    %v1265 = vunpack.c.l.b16 %v535
    %v1266 = vunpack.c.l.b16 %v536
    %v1267 = vunpack.c.h.b16 %v536
    %v1268 = vunpack.c.l.b16 %v537
    %v1269 = vunpack.c.l.b16 %v538
    %v1270 = vunpack.c.h.b16 %v538
    %v1271 = vunpack.c.l.b16 %v539
    %v1272 = vunpack.c.l.b16 %v540
    %v1273 = vunpack.c.h.b16 %v540
    %v1274 = vunpack.c.l.b16 %v541
    %v1275 = vunpack.c.l.b16 %v542
    %v1276 = vunpack.c.h.b16 %v542
    %v1277 = vunpack.c.l.b16 %v543
    %v1278 = vunpack.c.l.b16 %v544
    %v1279 = vunpack.c.h.b16 %v544
    %v1280 = vunpack.c.l.b16 %v545
    %v1281 = vunpack.c.l.b16 %v546
    %v1282 = vunpack.c.h.b16 %v546
    %v1283 = vunpack.c.l.b16 %v547
    %v1284 = vunpack.c.l.b16 %v548
    %v1285 = vunpack.c.h.b16 %v548
    %v1286 = vunpack.c.l.b16 %v549
    %v1287 = vunpack.c.l.b16 %v550
    %v1288 = vunpack.c.h.b16 %v550
    %v1289 = vunpack.c.l.b16 %v551
    %v1290 = vunpack.c.l.b16 %v552
    %v1291 = vunpack.c.h.b16 %v552
    %v1292 = vunpack.c.l.b16 %v553
    %v1293 = vunpack.c.l.b16 %v554
    %v1294 = vunpack.c.h.b16 %v554
    %v1295 = vunpack.c.l.b16 %v555
    %v1296 = vunpack.c.l.b16 %v556
    %v1297 = vunpack.c.h.b16 %v556
    %v1298 = vunpack.c.l.b16 %v557
    %v1299 = vunpack.c.l.b16 %v558
    %v1300 = vunpack.c.h.b16 %v558
    %v1301 = vunpack.c.l.b16 %v559
    %v1302 = vunpack.c.l.b16 %v560
    %v1303 = vunpack.c.h.b16 %v560
    %v1304 = vunpack.c.l.b16 %v561
    %v1305 = vunpack.c.l.b16 %v562
    %v1306 = vunpack.c.h.b16 %v562
    %v1307 = vunpack.c.l.b16 %v563
    %v1308 = vunpack.c.l.b16 %v564
    %v1309 = vunpack.c.h.b16 %v564
    %v1310 = vunpack.c.l.b16 %v565
    %v1311 = vunpack.c.l.b16 %v566
    %v1312 = vunpack.c.h.b16 %v566
    %v1313 = vunpack.c.l.b16 %v567
    %v1314 = vunpack.c.l.b16 %v568
    %v1315 = vunpack.c.h.b16 %v568
    %v1316 = vunpack.c.l.b16 %v569
    %v1317 = vunpack.c.l.b16 %v570
    %v1318 = vunpack.c.h.b16 %v570
    %v1319 = vunpack.c.l.b16 %v571
    %v1320 = vunpack.c.l.b16 %v572
    %v1321 = vunpack.c.h.b16 %v572
    %v1322 = vunpack.c.l.b16 %v573
    %v1323 = vunpack.c.l.b16 %v574
    %v1324 = vunpack.c.h.b16 %v574
    %v1325 = vunpack.c.l.b16 %v575
    %v1326 = vunpack.c.l.b16 %v576
    %v1327 = vunpack.c.h.b16 %v576
    %v1328 = vunpack.c.l.b16 %v577
    %v1329 = vunpack.c.l.b16 %v578
    %v1330 = vunpack.c.h.b16 %v578
    %v1331 = vunpack.c.l.b16 %v579
    %v1332 = vunpack.c.l.b16 %v580
    %v1333 = vunpack.c.h.b16 %v580
    %v1334 = vunpack.c.l.b16 %v581
    %v1335 = vunpack.c.l.b16 %v582
    %v1336 = vunpack.c.h.b16 %v582
    %v1337 = vunpack.c.l.b16 %v583
    %v1338 = vunpack.c.l.b16 %v584
    %v1339 = vunpack.c.h.b16 %v584
    %v1340 = vunpack.c.l.b16 %v585
    %v1341 = vunpack.c.l.b16 %v586
    %v1342 = vunpack.c.h.b16 %v586
    %v1343 = vunpack.c.l.b16 %v587
    %v1344 = vunpack.c.l.b16 %v588
    %v1345 = vunpack.c.h.b16 %v588
    %v1346 = vunpack.c.l.b16 %v589
    %v1347 = vunpack.c.l.b16 %v590
    %v1348 = vunpack.c.h.b16 %v590
    %v1349 = vunpack.c.l.b16 %v591
    %v1350 = vunpack.c.l.b16 %v592
    %v1351 = vunpack.c.h.b16 %v592
    %v1352 = vunpack.c.l.b16 %v593
    %v1353 = vunpack.c.l.b16 %v594
    %v1354 = vunpack.c.h.b16 %v594
    %v1355 = vunpack.c.l.b16 %v595
    %v1356 = vunpack.c.l.b16 %v596
    %v1357 = vunpack.c.h.b16 %v596
    %v1358 = vunpack.c.l.b16 %v597
    %v1359 = vunpack.c.l.b16 %v598
    %v1360 = vunpack.c.h.b16 %v598
    %v1361 = vunpack.c.l.b16 %v599
    %v1362 = vunpack.c.l.b16 %v600
    %v1363 = vunpack.c.h.b16 %v600
    %v1364 = vunpack.c.l.b16 %v601
    %v1365 = vunpack.c.l.b16 %v602
    %v1366 = vunpack.c.h.b16 %v602
    %v1367 = vunpack.c.l.b16 %v603
    %v1368 = vunpack.c.l.b16 %v604
    %v1369 = vunpack.c.h.b16 %v604
    %v1370 = vunpack.c.l.b16 %v605
    %v1371 = vunpack.c.l.b16 %v606
    %v1372 = vunpack.c.h.b16 %v606
    %v1373 = vunpack.c.l.b16 %v607
    %v1374 = vunpack.c.l.b16 %v608
    %v1375 = vunpack.c.h.b16 %v608
    %v1376 = vunpack.c.l.b16 %v609
    %v1377 = vunpack.c.l.b16 %v610
    %v1378 = vunpack.c.h.b16 %v610
    %v1379 = vunpack.c.l.b16 %v611
    %v1380 = vunpack.c.l.b16 %v612
    %v1381 = vunpack.c.h.b16 %v612
    %v1382 = vunpack.c.l.b16 %v613
    %v1383 = vunpack.c.l.b16 %v614
    %v1384 = vunpack.c.h.b16 %v614
    %v1385 = vunpack.c.l.b16 %v615
    %v1386 = vunpack.c.l.b16 %v616
    %v1387 = vunpack.c.h.b16 %v616
    %v1388 = vunpack.c.l.b16 %v617
    %v1389 = vunpack.c.l.b16 %v618
    %v1390 = vunpack.c.h.b16 %v618
    %v1391 = vunpack.c.l.b16 %v619
    %v1392 = vunpack.c.l.b16 %v620
    %v1393 = vunpack.c.h.b16 %v620
    %v1394 = vunpack.c.l.b16 %v621
    %v1395 = vunpack.c.l.b16 %v622
    %v1396 = vunpack.c.h.b16 %v622
    %v1397 = vunpack.c.l.b16 %v623
    %v1398 = vunpack.c.l.b16 %v624
    %v1399 = vunpack.c.h.b16 %v624
    %v1400 = vunpack.c.l.b16 %v625
    %v1401 = vunpack.c.l.b16 %v626
    %v1402 = vunpack.c.h.b16 %v626
    %v1403 = vunpack.c.l.b16 %v627
    %v1404 = vunpack.c.l.b16 %v628
    %v1405 = vunpack.c.h.b16 %v628
    %v1406 = vunpack.c.l.b16 %v629
    %v1407 = vunpack.c.l.b16 %v630
    %v1408 = vunpack.c.h.b16 %v630
    %v1409 = vunpack.c.l.b16 %v631
    %v1410 = vunpack.c.l.b16 %v632
    %v1411 = vunpack.c.h.b16 %v632
    %v1412 = vunpack.c.l.b16 %v633
    %v1413 = vunpack.c.l.b16 %v634
    %v1414 = vunpack.c.h.b16 %v634
    %v1415 = vunpack.c.l.b16 %v635
    %v1416 = vunpack.c.l.b16 %v636
    %v1417 = vunpack.c.h.b16 %v636
    %v1418 = vunpack.c.l.b16 %v637
    %v1419 = vunpack.c.l.b16 %v638
    %v1420 = vunpack.c.h.b16 %v638
    %v1421 = vunpack.c.l.b16 %v639
    %v1422 = vunpack.c.l.b16 %v640
    %v1423 = vunpack.c.h.b16 %v640
    %v1424 = vunpack.c.l.b16 %v641
    %v1425 = vunpack.c.l.b16 %v642
    %v1426 = vunpack.c.h.b16 %v642
    %v1427 = vunpack.c.l.b16 %v643
    %v1428 = vunpack.c.l.b16 %v644
    %v1429 = vunpack.c.h.b16 %v644
    %v1430 = vunpack.c.l.b16 %v645
    %v1431 = vunpack.c.l.b16 %v646
    %v1432 = vunpack.c.h.b16 %v646
    %v1433 = vunpack.c.l.b16 %v647
    %v1434 = vunpack.c.l.b16 %v648
    %v1435 = vunpack.c.h.b16 %v648
    %v1436 = vunpack.c.l.b16 %v649
    %v1437 = vunpack.c.l.b16 %v650
    %v1438 = vunpack.c.h.b16 %v650
    %v1439 = vunpack.c.l.b16 %v651
    %v1440 = vunpack.c.l.b16 %v652
    %v1441 = vunpack.c.h.b16 %v652
    %v1442 = vunpack.c.l.b16 %v653
    %v1443 = vunpack.c.l.b16 %v654
    %v1444 = vunpack.c.h.b16 %v654
    %v1445 = vunpack.c.l.b16 %v655
    %v1446 = vunpack.c.l.b16 %v656
    %v1447 = vunpack.c.h.b16 %v656
    %v1448 = vunpack.c.l.b16 %v657
    %v1449 = vunpack.c.l.b16 %v658
    %v1450 = vunpack.c.h.b16 %v658
    %v1451 = vunpack.c.l.b16 %v659
    %v1452 = vunpack.c.l.b16 %v660
    %v1453 = vunpack.c.h.b16 %v660
    %v1454 = vunpack.c.l.b16 %v661
    %v1455 = vunpack.c.l.b16 %v662
    %v1456 = vunpack.c.h.b16 %v662
    %v1457 = vunpack.c.l.b16 %v663
    %v1458 = vunpack.c.l.b16 %v664
    %v1459 = vunpack.c.h.b16 %v664
    %v1460 = vunpack.c.l.b16 %v665
    %v1461 = vunpack.c.l.b16 %v666
    %v1462 = vunpack.c.h.b16 %v666
    %v1463 = vunpack.c.l.b16 %v667
    %v1464 = vunpack.c.l.b16 %v668
    %v1465 = vunpack.c.h.b16 %v668
    %v1466 = vunpack.c.l.b16 %v669
    %v1467 = vunpack.c.l.b16 %v670
    %v1468 = vunpack.c.h.b16 %v670
    %v1469 = vunpack.c.l.b16 %v671
    %v1470 = vunpack.c.l.b16 %v672
    %v1471 = vunpack.c.h.b16 %v672
    %v1472 = vunpack.c.l.b16 %v673
    %v1473 = vunpack.c.l.b16 %v674
    %v1474 = vunpack.c.h.b16 %v674
    %v1475 = vunpack.c.l.b16 %v675
    %v1476 = vunpack.c.l.b16 %v676
    %v1477 = vunpack.c.h.b16 %v676
    %v1478 = vunpack.c.l.b16 %v677
    %v1479 = vunpack.c.l.b16 %v678
    %v1480 = vunpack.c.h.b16 %v678
    %v1481 = vunpack.c.l.b16 %v679
    %v1482 = vunpack.c.l.b16 %v680
    %v1483 = vunpack.c.h.b16 %v680
    %v1484 = vunpack.c.l.b16 %v681
    %v1485 = vunpack.c.l.b16 %v682
    %v1486 = vunpack.c.h.b16 %v682
    %v1487 = vunpack.c.l.b16 %v683
    %v1488 = vunpack.c.l.b16 %v684
    %v1489 = vunpack.c.h.b16 %v684
    %v1490 = vunpack.c.l.b16 %v685
    %v1491 = vunpack.c.l.b16 %v686
    %v1492 = vunpack.c.h.b16 %v686
    %v1493 = vunpack.c.l.b16 %v687
    %v1494 = vunpack.c.l.b16 %v688
    %v1495 = vunpack.c.h.b16 %v688
    %v1496 = vunpack.c.l.b16 %v689
    %v1497 = vunpack.c.l.b16 %v690
    %v1498 = vunpack.c.h.b16 %v690
    %v1499 = vunpack.c.l.b16 %v691
    %v1500 = vpack.c.b16 %v1023, %v1020
    %v1501 = vpack.c.b16 %v1024, %v1021
    %v1502 = vpack.c.b16 %v1025, %v1022
    %v1503 = vpack.c.b16 %v1029, %v1026
    %v1504 = vpack.c.b16 %v1030, %v1027
    %v1505 = vpack.c.b16 %v1031, %v1028
    %v1506 = vpack.c.b16 %v1035, %v1032
    %v1507 = vpack.c.b16 %v1036, %v1033
    %v1508 = vpack.c.b16 %v1037, %v1034
    %v1509 = vpack.c.b16 %v1041, %v1038
    %v1510 = vpack.c.b16 %v1042, %v1039
    %v1511 = vpack.c.b16 %v1043, %v1040
    %v1512 = vpack.c.b16 %v1047, %v1044
    %v1513 = vpack.c.b16 %v1048, %v1045
    %v1514 = vpack.c.b16 %v1049, %v1046
    %v1515 = vpack.c.b16 %v1053, %v1050
    %v1516 = vpack.c.b16 %v1054, %v1051
    %v1517 = vpack.c.b16 %v1055, %v1052
    %v1518 = vpack.c.b16 %v1059, %v1056
    %v1519 = vpack.c.b16 %v1060, %v1057
    %v1520 = vpack.c.b16 %v1061, %v1058
    %v1521 = vpack.c.b16 %v1065, %v1062
    %v1522 = vpack.c.b16 %v1066, %v1063
    %v1523 = vpack.c.b16 %v1067, %v1064
    %v1524 = vpack.c.b16 %v1071, %v1068
    %v1525 = vpack.c.b16 %v1072, %v1069
    %v1526 = vpack.c.b16 %v1073, %v1070
    %v1527 = vpack.c.b16 %v1077, %v1074
    %v1528 = vpack.c.b16 %v1078, %v1075
    %v1529 = vpack.c.b16 %v1079, %v1076
    %v1530 = vpack.c.b16 %v1083, %v1080
    %v1531 = vpack.c.b16 %v1084, %v1081
    %v1532 = vpack.c.b16 %v1085, %v1082
    %v1533 = vpack.c.b16 %v1089, %v1086
    %v1534 = vpack.c.b16 %v1090, %v1087
    %v1535 = vpack.c.b16 %v1091, %v1088
    %v1536 = vpack.c.b16 %v1095, %v1092
    %v1537 = vpack.c.b16 %v1096, %v1093
    %v1538 = vpack.c.b16 %v1097, %v1094
    %v1539 = vpack.c.b16 %v1101, %v1098
    %v1540 = vpack.c.b16 %v1102, %v1099
    %v1541 = vpack.c.b16 %v1103, %v1100
    %v1542 = vpack.c.b16 %v1107, %v1104
    %v1543 = vpack.c.b16 %v1108, %v1105
    %v1544 = vpack.c.b16 %v1109, %v1106
    %v1545 = vpack.c.b16 %v1113, %v1110
    %v1546 = vpack.c.b16 %v1114, %v1111
    %v1547 = vpack.c.b16 %v1115, %v1112
    %v1548 = vpack.c.b16 %v1119, %v1116
    %v1549 = vpack.c.b16 %v1120, %v1117
    %v1550 = vpack.c.b16 %v1121, %v1118
    %v1551 = vpack.c.b16 %v1125, %v1122
    %v1552 = vpack.c.b16 %v1126, %v1123
    %v1553 = vpack.c.b16 %v1127, %v1124
    %v1554 = vpack.c.b16 %v1131, %v1128
    %v1555 = vpack.c.b16 %v1132, %v1129
    %v1556 = vpack.c.b16 %v1133, %v1130
    %v1557 = vpack.c.b16 %v1137, %v1134
    %v1558 = vpack.c.b16 %v1138, %v1135
    %v1559 = vpack.c.b16 %v1139, %v1136
    %v1560 = vpack.c.b16 %v1143, %v1140
    %v1561 = vpack.c.b16 %v1144, %v1141
    %v1562 = vpack.c.b16 %v1145, %v1142
    %v1563 = vpack.c.b16 %v1149, %v1146
    %v1564 = vpack.c.b16 %v1150, %v1147
    %v1565 = vpack.c.b16 %v1151, %v1148
    %v1566 = vpack.c.b16 %v1155, %v1152
    %v1567 = vpack.c.b16 %v1156, %v1153
    %v1568 = vpack.c.b16 %v1157, %v1154
    %v1569 = vpack.c.b16 %v1161, %v1158
    %v1570 = vpack.c.b16 %v1162, %v1159
    %v1571 = vpack.c.b16 %v1163, %v1160
    %v1572 = vpack.c.b16 %v1167, %v1164
    %v1573 = vpack.c.b16 %v1168, %v1165
    %v1574 = vpack.c.b16 %v1169, %v1166
    %v1575 = vpack.c.b16 %v1173, %v1170
    %v1576 = vpack.c.b16 %v1174, %v1171
    %v1577 = vpack.c.b16 %v1175, %v1172
    %v1578 = vpack.c.b16 %v1179, %v1176
    %v1579 = vpack.c.b16 %v1180, %v1177
    %v1580 = vpack.c.b16 %v1181, %v1178
    %v1581 = vpack.c.b16 %v1185, %v1182
    %v1582 = vpack.c.b16 %v1186, %v1183
    %v1583 = vpack.c.b16 %v1187, %v1184
    %v1584 = vpack.c.b16 %v1191, %v1188
    %v1585 = vpack.c.b16 %v1192, %v1189
    %v1586 = vpack.c.b16 %v1193, %v1190
    %v1587 = vpack.c.b16 %v1197, %v1194
    %v1588 = vpack.c.b16 %v1198, %v1195
    %v1589 = vpack.c.b16 %v1199, %v1196
    %v1590 = vpack.c.b16 %v1203, %v1200
    %v1591 = vpack.c.b16 %v1204, %v1201
    %v1592 = vpack.c.b16 %v1205, %v1202
    %v1593 = vpack.c.b16 %v1209, %v1206
    %v1594 = vpack.c.b16 %v1210, %v1207
    %v1595 = vpack.c.b16 %v1211, %v1208
    %v1596 = vpack.c.b16 %v1215, %v1212
    %v1597 = vpack.c.b16 %v1216, %v1213
    %v1598 = vpack.c.b16 %v1217, %v1214
    %v1599 = vpack.c.b16 %v1221, %v1218
    %v1600 = vpack.c.b16 %v1222, %v1219
    %v1601 = vpack.c.b16 %v1223, %v1220
    %v1602 = vpack.c.b16 %v1227, %v1224
    %v1603 = vpack.c.b16 %v1228, %v1225
    %v1604 = vpack.c.b16 %v1229, %v1226
    %v1605 = vpack.c.b16 %v1233, %v1230
    %v1606 = vpack.c.b16 %v1234, %v1231
    %v1607 = vpack.c.b16 %v1235, %v1232
    %v1608 = vpack.c.b16 %v1239, %v1236
    %v1609 = vpack.c.b16 %v1240, %v1237
    %v1610 = vpack.c.b16 %v1241, %v1238
    %v1611 = vpack.c.b16 %v1245, %v1242
    %v1612 = vpack.c.b16 %v1246, %v1243
    %v1613 = vpack.c.b16 %v1247, %v1244
    %v1614 = vpack.c.b16 %v1251, %v1248
    %v1615 = vpack.c.b16 %v1252, %v1249
    %v1616 = vpack.c.b16 %v1253, %v1250
    %v1617 = vpack.c.b16 %v1257, %v1254
    %v1618 = vpack.c.b16 %v1258, %v1255
    %v1619 = vpack.c.b16 %v1259, %v1256
    %v1620 = vpack.c.b16 %v1263, %v1260
    %v1621 = vpack.c.b16 %v1264, %v1261
    %v1622 = vpack.c.b16 %v1265, %v1262
    %v1623 = vpack.c.b16 %v1269, %v1266
    %v1624 = vpack.c.b16 %v1270, %v1267
    %v1625 = vpack.c.b16 %v1271, %v1268
    %v1626 = vpack.c.b16 %v1275, %v1272
    %v1627 = vpack.c.b16 %v1276, %v1273
    %v1628 = vpack.c.b16 %v1277, %v1274
    %v1629 = vpack.c.b16 %v1281, %v1278
    %v1630 = vpack.c.b16 %v1282, %v1279
    %v1631 = vpack.c.b16 %v1283, %v1280
    %v1632 = vpack.c.b16 %v1287, %v1284
    %v1633 = vpack.c.b16 %v1288, %v1285
    %v1634 = vpack.c.b16 %v1289, %v1286
    %v1635 = vpack.c.b16 %v1293, %v1290
    %v1636 = vpack.c.b16 %v1294, %v1291
    %v1637 = vpack.c.b16 %v1295, %v1292
    %v1638 = vpack.c.b16 %v1299, %v1296
    %v1639 = vpack.c.b16 %v1300, %v1297
    %v1640 = vpack.c.b16 %v1301, %v1298
    %v1641 = vpack.c.b16 %v1305, %v1302
    %v1642 = vpack.c.b16 %v1306, %v1303
    %v1643 = vpack.c.b16 %v1307, %v1304
    %v1644 = vpack.c.b16 %v1311, %v1308
    %v1645 = vpack.c.b16 %v1312, %v1309
    %v1646 = vpack.c.b16 %v1313, %v1310
    %v1647 = vpack.c.b16 %v1317, %v1314
    %v1648 = vpack.c.b16 %v1318, %v1315
    %v1649 = vpack.c.b16 %v1319, %v1316
    %v1650 = vpack.c.b16 %v1323, %v1320
    %v1651 = vpack.c.b16 %v1324, %v1321
    %v1652 = vpack.c.b16 %v1325, %v1322
    %v1653 = vpack.c.b16 %v1329, %v1326
    %v1654 = vpack.c.b16 %v1330, %v1327
    %v1655 = vpack.c.b16 %v1331, %v1328
    %v1656 = vpack.c.b16 %v1335, %v1332
    %v1657 = vpack.c.b16 %v1336, %v1333
    %v1658 = vpack.c.b16 %v1337, %v1334
    %v1659 = vpack.c.b16 %v1341, %v1338
    %v1660 = vpack.c.b16 %v1342, %v1339
    %v1661 = vpack.c.b16 %v1343, %v1340
    %v1662 = vpack.c.b16 %v1347, %v1344
    %v1663 = vpack.c.b16 %v1348, %v1345
    %v1664 = vpack.c.b16 %v1349, %v1346
    %v1665 = vpack.c.b16 %v1353, %v1350
    %v1666 = vpack.c.b16 %v1354, %v1351
    %v1667 = vpack.c.b16 %v1355, %v1352
    %v1668 = vpack.c.b16 %v1359, %v1356
    %v1669 = vpack.c.b16 %v1360, %v1357
    %v1670 = vpack.c.b16 %v1361, %v1358
    %v1671 = vpack.c.b16 %v1365, %v1362
    %v1672 = vpack.c.b16 %v1366, %v1363
    %v1673 = vpack.c.b16 %v1367, %v1364
    %v1674 = vpack.c.b16 %v1371, %v1368
    %v1675 = vpack.c.b16 %v1372, %v1369
    %v1676 = vpack.c.b16 %v1373, %v1370
    %v1677 = vpack.c.b16 %v1377, %v1374
    %v1678 = vpack.c.b16 %v1378, %v1375
    %v1679 = vpack.c.b16 %v1379, %v1376
    %v1680 = vpack.c.b16 %v1383, %v1380
    %v1681 = vpack.c.b16 %v1384, %v1381
    %v1682 = vpack.c.b16 %v1385, %v1382
    %v1683 = vpack.c.b16 %v1389, %v1386
    %v1684 = vpack.c.b16 %v1390, %v1387
    %v1685 = vpack.c.b16 %v1391, %v1388
    %v1686 = vpack.c.b16 %v1395, %v1392
    %v1687 = vpack.c.b16 %v1396, %v1393
    %v1688 = vpack.c.b16 %v1397, %v1394
    %v1689 = vpack.c.b16 %v1401, %v1398
    %v1690 = vpack.c.b16 %v1402, %v1399
    %v1691 = vpack.c.b16 %v1403, %v1400
    %v1692 = vpack.c.b16 %v1407, %v1404
    %v1693 = vpack.c.b16 %v1408, %v1405
    %v1694 = vpack.c.b16 %v1409, %v1406
    %v1695 = vpack.c.b16 %v1413, %v1410
    %v1696 = vpack.c.b16 %v1414, %v1411
    %v1697 = vpack.c.b16 %v1415, %v1412
    %v1698 = vpack.c.b16 %v1419, %v1416
    %v1699 = vpack.c.b16 %v1420, %v1417
    %v1700 = vpack.c.b16 %v1421, %v1418
    %v1701 = vpack.c.b16 %v1425, %v1422
    %v1702 = vpack.c.b16 %v1426, %v1423
    %v1703 = vpack.c.b16 %v1427, %v1424
    %v1704 = vpack.c.b16 %v1431, %v1428
    %v1705 = vpack.c.b16 %v1432, %v1429
    %v1706 = vpack.c.b16 %v1433, %v1430
    %v1707 = vpack.c.b16 %v1437, %v1434
    %v1708 = vpack.c.b16 %v1438, %v1435
    %v1709 = vpack.c.b16 %v1439, %v1436
    %v1710 = vpack.c.b16 %v1443, %v1440
    %v1711 = vpack.c.b16 %v1444, %v1441
    %v1712 = vpack.c.b16 %v1445, %v1442
    %v1713 = vpack.c.b16 %v1449, %v1446
    %v1714 = vpack.c.b16 %v1450, %v1447
    %v1715 = vpack.c.b16 %v1451, %v1448
    %v1716 = vpack.c.b16 %v1455, %v1452
    %v1717 = vpack.c.b16 %v1456, %v1453
    %v1718 = vpack.c.b16 %v1457, %v1454
    %v1719 = vpack.c.b16 %v1461, %v1458
    %v1720 = vpack.c.b16 %v1462, %v1459
    %v1721 = vpack.c.b16 %v1463, %v1460
    %v1722 = vpack.c.b16 %v1467, %v1464
    %v1723 = vpack.c.b16 %v1468, %v1465
    %v1724 = vpack.c.b16 %v1469, %v1466
    %v1725 = vpack.c.b16 %v1473, %v1470
    %v1726 = vpack.c.b16 %v1474, %v1471
    %v1727 = vpack.c.b16 %v1475, %v1472
    %v1728 = vpack.c.b16 %v1479, %v1476
    %v1729 = vpack.c.b16 %v1480, %v1477
    %v1730 = vpack.c.b16 %v1481, %v1478
    %v1731 = vpack.c.b16 %v1485, %v1482
    %v1732 = vpack.c.b16 %v1486, %v1483
    %v1733 = vpack.c.b16 %v1487, %v1484
    %v1734 = vpack.c.b16 %v1491, %v1488
    %v1735 = vpack.c.b16 %v1492, %v1489
    %v1736 = vpack.c.b16 %v1493, %v1490
    %v1737 = vpack.c.b16 %v1497, %v1494
    %v1738 = vpack.c.b16 %v1498, %v1495
    %v1739 = vpack.c.b16 %v1499, %v1496
    %1980 = vmatpush.bf16.msra.mxu0 %v1521
    %1981 = vmatpush.bf16.msra.mxu0 %v1518
    %1982 = vmatpush.bf16.msra.mxu0 %v1515
    %1983 = vmatpush.bf16.msra.mxu0 %v1512
    %1984 = vmatpush.bf16.msra.mxu0 %v1509
    %1985 = vmatpush.bf16.msra.mxu0 %v1506
    %1986 = vmatpush.bf16.msra.mxu0 %v1503
    %1987 = vmatpush.bf16.msra.mxu0 %v1500
    %1988 = vmatmul.bf16.gmra.mxu0 %v362
    %v1989 = vpop.f32.mrf.mxu0
    %v1990 = vadd.f32 %v694, %v1989
    %v1991 = vpop.f32.mrf.mxu0
    %1992 = vdwg.mxu0
    %1993 = vmatpush.bf16.msra.mxu0 %v1545
    %1994 = vmatpush.bf16.msra.mxu0 %v1542
    %1995 = vmatpush.bf16.msra.mxu0 %v1539
    %1996 = vmatpush.bf16.msra.mxu0 %v1536
    %1997 = vmatpush.bf16.msra.mxu0 %v1533
    %1998 = vmatpush.bf16.msra.mxu0 %v1530
    %1999 = vmatpush.bf16.msra.mxu0 %v1527
    %2000 = vmatpush.bf16.msra.mxu0 %v1524
    %2001 = vmatmul.bf16.gmra.mxu0 %v363
    %v2002 = vpop.f32.mrf.mxu0
    %v2003 = vadd.f32 %v1990, %v2002
    %v2004 = vpop.f32.mrf.mxu0
    %2005 = vdwg.mxu0
    %2006 = vmatpush.bf16.msra.mxu0 %v1569
    %2007 = vmatpush.bf16.msra.mxu0 %v1566
    %2008 = vmatpush.bf16.msra.mxu0 %v1563
    %2009 = vmatpush.bf16.msra.mxu0 %v1560
    %2010 = vmatpush.bf16.msra.mxu0 %v1557
    %2011 = vmatpush.bf16.msra.mxu0 %v1554
    %2012 = vmatpush.bf16.msra.mxu0 %v1551
    %2013 = vmatpush.bf16.msra.mxu0 %v1548
    %2014 = vmatmul.bf16.gmra.mxu0 %v364
    %v2015 = vpop.f32.mrf.mxu0
    %v2016 = vadd.f32 %v2003, %v2015
    %v2017 = vpop.f32.mrf.mxu0
    %2018 = vdwg.mxu0
    %2019 = vmatpush.bf16.msra.mxu0 %v1593
    %2020 = vmatpush.bf16.msra.mxu0 %v1590
    %2021 = vmatpush.bf16.msra.mxu0 %v1587
    %2022 = vmatpush.bf16.msra.mxu0 %v1584
    %2023 = vmatpush.bf16.msra.mxu0 %v1581
    %2024 = vmatpush.bf16.msra.mxu0 %v1578
    %2025 = vmatpush.bf16.msra.mxu0 %v1575
    %2026 = vmatpush.bf16.msra.mxu0 %v1572
    %2027 = vmatmul.bf16.gmra.mxu0 %v365
    %v2028 = vpop.f32.mrf.mxu0
    %v2029 = vadd.f32 %v2016, %v2028
    %v2030 = vpop.f32.mrf.mxu0
    %2031 = vdwg.mxu0
    %2032 = vmatpush.bf16.msra.mxu0 %v1617
    %2033 = vmatpush.bf16.msra.mxu0 %v1614
    %2034 = vmatpush.bf16.msra.mxu0 %v1611
    %2035 = vmatpush.bf16.msra.mxu0 %v1608
    %2036 = vmatpush.bf16.msra.mxu0 %v1605
    %2037 = vmatpush.bf16.msra.mxu0 %v1602
    %2038 = vmatpush.bf16.msra.mxu0 %v1599
    %2039 = vmatpush.bf16.msra.mxu0 %v1596
    %2040 = vmatmul.bf16.gmra.mxu0 %v366
    %v2041 = vpop.f32.mrf.mxu0
    %v2042 = vadd.f32 %v2029, %v2041
    %v2043 = vpop.f32.mrf.mxu0
    %2044 = vdwg.mxu0
    %2045 = vmatpush.bf16.msra.mxu0 %v1641
    %2046 = vmatpush.bf16.msra.mxu0 %v1638
    %2047 = vmatpush.bf16.msra.mxu0 %v1635
    %2048 = vmatpush.bf16.msra.mxu0 %v1632
    %2049 = vmatpush.bf16.msra.mxu0 %v1629
    %2050 = vmatpush.bf16.msra.mxu0 %v1626
    %2051 = vmatpush.bf16.msra.mxu0 %v1623
    %2052 = vmatpush.bf16.msra.mxu0 %v1620
    %2053 = vmatmul.bf16.gmra.mxu0 %v367
    %v2054 = vpop.f32.mrf.mxu0
    %v2055 = vadd.f32 %v2042, %v2054
    %v2056 = vpop.f32.mrf.mxu0
    %2057 = vdwg.mxu0
    %2058 = vmatpush.bf16.msra.mxu0 %v1665
    %2059 = vmatpush.bf16.msra.mxu0 %v1662
    %2060 = vmatpush.bf16.msra.mxu0 %v1659
    %2061 = vmatpush.bf16.msra.mxu0 %v1656
    %2062 = vmatpush.bf16.msra.mxu0 %v1653
    %2063 = vmatpush.bf16.msra.mxu0 %v1650
    %2064 = vmatpush.bf16.msra.mxu0 %v1647
    %2065 = vmatpush.bf16.msra.mxu0 %v1644
    %2066 = vmatmul.bf16.gmra.mxu0 %v368
    %v2067 = vpop.f32.mrf.mxu0
    %v2068 = vadd.f32 %v2055, %v2067
    %v2069 = vpop.f32.mrf.mxu0
    %2070 = vdwg.mxu0
    %2071 = vmatpush.bf16.msra.mxu0 %v1689
    %2072 = vmatpush.bf16.msra.mxu0 %v1686
    %2073 = vmatpush.bf16.msra.mxu0 %v1683
    %2074 = vmatpush.bf16.msra.mxu0 %v1680
    %2075 = vmatpush.bf16.msra.mxu0 %v1677
    %2076 = vmatpush.bf16.msra.mxu0 %v1674
    %2077 = vmatpush.bf16.msra.mxu0 %v1671
    %2078 = vmatpush.bf16.msra.mxu0 %v1668
    %2079 = vmatmul.bf16.gmra.mxu0 %v369
    %v2080 = vpop.f32.mrf.mxu0
    %v2081 = vadd.f32 %v2068, %v2080
    %v2082 = vpop.f32.mrf.mxu0
    %2083 = vdwg.mxu0
    %2084 = vmatpush.bf16.msra.mxu0 %v1713
    %2085 = vmatpush.bf16.msra.mxu0 %v1710
    %2086 = vmatpush.bf16.msra.mxu0 %v1707
    %2087 = vmatpush.bf16.msra.mxu0 %v1704
    %2088 = vmatpush.bf16.msra.mxu0 %v1701
    %2089 = vmatpush.bf16.msra.mxu0 %v1698
    %2090 = vmatpush.bf16.msra.mxu0 %v1695
    %2091 = vmatpush.bf16.msra.mxu0 %v1692
    %2092 = vmatmul.bf16.gmra.mxu0 %v370
    %v2093 = vpop.f32.mrf.mxu0
    %v2094 = vadd.f32 %v2081, %v2093
    %v2095 = vpop.f32.mrf.mxu0
    %2096 = vdwg.mxu0
    %2097 = vmatpush.bf16.msra.mxu0 %v1737
    %2098 = vmatpush.bf16.msra.mxu0 %v1734
    %2099 = vmatpush.bf16.msra.mxu0 %v1731
    %2100 = vmatpush.bf16.msra.mxu0 %v1728
    %2101 = vmatpush.bf16.msra.mxu0 %v1725
    %2102 = vmatpush.bf16.msra.mxu0 %v1722
    %2103 = vmatpush.bf16.msra.mxu0 %v1719
    %2104 = vmatpush.bf16.msra.mxu0 %v1716
    %2105 = vmatmul.bf16.gmra.mxu0 %v371
    %v2106 = vpop.f32.mrf.mxu0
    %v2107 = vadd.f32 %v2094, %v2106
    %v2108 = vpop.f32.mrf.mxu0
    %2109 = vdwg.mxu0
    %2110 = vmatpush.bf16.msra.mxu0 %v1522
    %2111 = vmatpush.bf16.msra.mxu0 %v1519
    %2112 = vmatpush.bf16.msra.mxu0 %v1516
    %2113 = vmatpush.bf16.msra.mxu0 %v1513
    %2114 = vmatpush.bf16.msra.mxu0 %v1510
    %2115 = vmatpush.bf16.msra.mxu0 %v1507
    %2116 = vmatpush.bf16.msra.mxu0 %v1504
    %2117 = vmatpush.bf16.msra.mxu0 %v1501
    %2118 = vmatmul.bf16.gmra.mxu0 %v362
    %v2119 = vpop.f32.mrf.mxu0
    %v2120 = vadd.f32 %v695, %v2119
    %v2121 = vpop.f32.mrf.mxu0
    %2122 = vdwg.mxu0
    %2123 = vmatpush.bf16.msra.mxu0 %v1546
    %2124 = vmatpush.bf16.msra.mxu0 %v1543
    %2125 = vmatpush.bf16.msra.mxu0 %v1540
    %2126 = vmatpush.bf16.msra.mxu0 %v1537
    %2127 = vmatpush.bf16.msra.mxu0 %v1534
    %2128 = vmatpush.bf16.msra.mxu0 %v1531
    %2129 = vmatpush.bf16.msra.mxu0 %v1528
    %2130 = vmatpush.bf16.msra.mxu0 %v1525
    %2131 = vmatmul.bf16.gmra.mxu0 %v363
    %v2132 = vpop.f32.mrf.mxu0
    %v2133 = vadd.f32 %v2120, %v2132
    %v2134 = vpop.f32.mrf.mxu0
    %2135 = vdwg.mxu0
    %2136 = vmatpush.bf16.msra.mxu0 %v1570
    %2137 = vmatpush.bf16.msra.mxu0 %v1567
    %2138 = vmatpush.bf16.msra.mxu0 %v1564
    %2139 = vmatpush.bf16.msra.mxu0 %v1561
    %2140 = vmatpush.bf16.msra.mxu0 %v1558
    %2141 = vmatpush.bf16.msra.mxu0 %v1555
    %2142 = vmatpush.bf16.msra.mxu0 %v1552
    %2143 = vmatpush.bf16.msra.mxu0 %v1549
    %2144 = vmatmul.bf16.gmra.mxu0 %v364
    %v2145 = vpop.f32.mrf.mxu0
    %v2146 = vadd.f32 %v2133, %v2145
    %v2147 = vpop.f32.mrf.mxu0
    %2148 = vdwg.mxu0
    %2149 = vmatpush.bf16.msra.mxu0 %v1594
    %2150 = vmatpush.bf16.msra.mxu0 %v1591
    %2151 = vmatpush.bf16.msra.mxu0 %v1588
    %2152 = vmatpush.bf16.msra.mxu0 %v1585
    %2153 = vmatpush.bf16.msra.mxu0 %v1582
    %2154 = vmatpush.bf16.msra.mxu0 %v1579
    %2155 = vmatpush.bf16.msra.mxu0 %v1576
    %2156 = vmatpush.bf16.msra.mxu0 %v1573
    %2157 = vmatmul.bf16.gmra.mxu0 %v365
    %v2158 = vpop.f32.mrf.mxu0
    %v2159 = vadd.f32 %v2146, %v2158
    %v2160 = vpop.f32.mrf.mxu0
    %2161 = vdwg.mxu0
    %2162 = vmatpush.bf16.msra.mxu0 %v1618
    %2163 = vmatpush.bf16.msra.mxu0 %v1615
    %2164 = vmatpush.bf16.msra.mxu0 %v1612
    %2165 = vmatpush.bf16.msra.mxu0 %v1609
    %2166 = vmatpush.bf16.msra.mxu0 %v1606
    %2167 = vmatpush.bf16.msra.mxu0 %v1603
    %2168 = vmatpush.bf16.msra.mxu0 %v1600
    %2169 = vmatpush.bf16.msra.mxu0 %v1597
    %2170 = vmatmul.bf16.gmra.mxu0 %v366
    %v2171 = vpop.f32.mrf.mxu0
    %v2172 = vadd.f32 %v2159, %v2171
    %v2173 = vpop.f32.mrf.mxu0
    %2174 = vdwg.mxu0
    %2175 = vmatpush.bf16.msra.mxu0 %v1642
    %2176 = vmatpush.bf16.msra.mxu0 %v1639
    %2177 = vmatpush.bf16.msra.mxu0 %v1636
    %2178 = vmatpush.bf16.msra.mxu0 %v1633
    %2179 = vmatpush.bf16.msra.mxu0 %v1630
    %2180 = vmatpush.bf16.msra.mxu0 %v1627
    %2181 = vmatpush.bf16.msra.mxu0 %v1624
    %2182 = vmatpush.bf16.msra.mxu0 %v1621
    %2183 = vmatmul.bf16.gmra.mxu0 %v367
    %v2184 = vpop.f32.mrf.mxu0
    %v2185 = vadd.f32 %v2172, %v2184
    %v2186 = vpop.f32.mrf.mxu0
    %2187 = vdwg.mxu0
    %2188 = vmatpush.bf16.msra.mxu0 %v1666
    %2189 = vmatpush.bf16.msra.mxu0 %v1663
    %2190 = vmatpush.bf16.msra.mxu0 %v1660
    %2191 = vmatpush.bf16.msra.mxu0 %v1657
    %2192 = vmatpush.bf16.msra.mxu0 %v1654
    %2193 = vmatpush.bf16.msra.mxu0 %v1651
    %2194 = vmatpush.bf16.msra.mxu0 %v1648
    %2195 = vmatpush.bf16.msra.mxu0 %v1645
    %2196 = vmatmul.bf16.gmra.mxu0 %v368
    %v2197 = vpop.f32.mrf.mxu0
    %v2198 = vadd.f32 %v2185, %v2197
    %v2199 = vpop.f32.mrf.mxu0
    %2200 = vdwg.mxu0
    %2201 = vmatpush.bf16.msra.mxu0 %v1690
    %2202 = vmatpush.bf16.msra.mxu0 %v1687
    %2203 = vmatpush.bf16.msra.mxu0 %v1684
    %2204 = vmatpush.bf16.msra.mxu0 %v1681
    %2205 = vmatpush.bf16.msra.mxu0 %v1678
    %2206 = vmatpush.bf16.msra.mxu0 %v1675
    %2207 = vmatpush.bf16.msra.mxu0 %v1672
    %2208 = vmatpush.bf16.msra.mxu0 %v1669
    %2209 = vmatmul.bf16.gmra.mxu0 %v369
    %v2210 = vpop.f32.mrf.mxu0
    %v2211 = vadd.f32 %v2198, %v2210
    %v2212 = vpop.f32.mrf.mxu0
    %2213 = vdwg.mxu0
    %2214 = vmatpush.bf16.msra.mxu0 %v1714
    %2215 = vmatpush.bf16.msra.mxu0 %v1711
    %2216 = vmatpush.bf16.msra.mxu0 %v1708
    %2217 = vmatpush.bf16.msra.mxu0 %v1705
    %2218 = vmatpush.bf16.msra.mxu0 %v1702
    %2219 = vmatpush.bf16.msra.mxu0 %v1699
    %2220 = vmatpush.bf16.msra.mxu0 %v1696
    %2221 = vmatpush.bf16.msra.mxu0 %v1693
    %2222 = vmatmul.bf16.gmra.mxu0 %v370
    %v2223 = vpop.f32.mrf.mxu0
    %v2224 = vadd.f32 %v2211, %v2223
    %v2225 = vpop.f32.mrf.mxu0
    %2226 = vdwg.mxu0
    %2227 = vmatpush.bf16.msra.mxu0 %v1738
    %2228 = vmatpush.bf16.msra.mxu0 %v1735
    %2229 = vmatpush.bf16.msra.mxu0 %v1732
    %2230 = vmatpush.bf16.msra.mxu0 %v1729
    %2231 = vmatpush.bf16.msra.mxu0 %v1726
    %2232 = vmatpush.bf16.msra.mxu0 %v1723
    %2233 = vmatpush.bf16.msra.mxu0 %v1720
    %2234 = vmatpush.bf16.msra.mxu0 %v1717
    %2235 = vmatmul.bf16.gmra.mxu0 %v371
    %v2236 = vpop.f32.mrf.mxu0
    %v2237 = vadd.f32 %v2224, %v2236
    %v2238 = vpop.f32.mrf.mxu0
    %2239 = vdwg.mxu0
    %2240 = vmatpush.bf16.msra.mxu0 %v1523
    %2241 = vmatpush.bf16.msra.mxu0 %v1520
    %2242 = vmatpush.bf16.msra.mxu0 %v1517
    %2243 = vmatpush.bf16.msra.mxu0 %v1514
    %2244 = vmatpush.bf16.msra.mxu0 %v1511
    %2245 = vmatpush.bf16.msra.mxu0 %v1508
    %2246 = vmatpush.bf16.msra.mxu0 %v1505
    %2247 = vmatpush.bf16.msra.mxu0 %v1502
    %2248 = vmatmul.bf16.gmra.mxu0 %v362
    %v2249 = vpop.f32.mrf.mxu0
    %v2250 = vadd.f32 %v696, %v2249
    %v2251 = vpop.f32.mrf.mxu0
    %2252 = vdwg.mxu0
    %2253 = vmatpush.bf16.msra.mxu0 %v1547
    %2254 = vmatpush.bf16.msra.mxu0 %v1544
    %2255 = vmatpush.bf16.msra.mxu0 %v1541
    %2256 = vmatpush.bf16.msra.mxu0 %v1538
    %2257 = vmatpush.bf16.msra.mxu0 %v1535
    %2258 = vmatpush.bf16.msra.mxu0 %v1532
    %2259 = vmatpush.bf16.msra.mxu0 %v1529
    %2260 = vmatpush.bf16.msra.mxu0 %v1526
    %2261 = vmatmul.bf16.gmra.mxu0 %v363
    %v2262 = vpop.f32.mrf.mxu0
    %v2263 = vadd.f32 %v2250, %v2262
    %v2264 = vpop.f32.mrf.mxu0
    %2265 = vdwg.mxu0
    %2266 = vmatpush.bf16.msra.mxu0 %v1571
    %2267 = vmatpush.bf16.msra.mxu0 %v1568
    %2268 = vmatpush.bf16.msra.mxu0 %v1565
    %2269 = vmatpush.bf16.msra.mxu0 %v1562
    %2270 = vmatpush.bf16.msra.mxu0 %v1559
    %2271 = vmatpush.bf16.msra.mxu0 %v1556
    %2272 = vmatpush.bf16.msra.mxu0 %v1553
    %2273 = vmatpush.bf16.msra.mxu0 %v1550
    %2274 = vmatmul.bf16.gmra.mxu0 %v364
    %v2275 = vpop.f32.mrf.mxu0
    %v2276 = vadd.f32 %v2263, %v2275
    %v2277 = vpop.f32.mrf.mxu0
    %2278 = vdwg.mxu0
    %2279 = vmatpush.bf16.msra.mxu0 %v1595
    %2280 = vmatpush.bf16.msra.mxu0 %v1592
    %2281 = vmatpush.bf16.msra.mxu0 %v1589
    %2282 = vmatpush.bf16.msra.mxu0 %v1586
    %2283 = vmatpush.bf16.msra.mxu0 %v1583
    %2284 = vmatpush.bf16.msra.mxu0 %v1580
    %2285 = vmatpush.bf16.msra.mxu0 %v1577
    %2286 = vmatpush.bf16.msra.mxu0 %v1574
    %2287 = vmatmul.bf16.gmra.mxu0 %v365
    %v2288 = vpop.f32.mrf.mxu0
    %v2289 = vadd.f32 %v2276, %v2288
    %v2290 = vpop.f32.mrf.mxu0
    %2291 = vdwg.mxu0
    %2292 = vmatpush.bf16.msra.mxu0 %v1619
    %2293 = vmatpush.bf16.msra.mxu0 %v1616
    %2294 = vmatpush.bf16.msra.mxu0 %v1613
    %2295 = vmatpush.bf16.msra.mxu0 %v1610
    %2296 = vmatpush.bf16.msra.mxu0 %v1607
    %2297 = vmatpush.bf16.msra.mxu0 %v1604
    %2298 = vmatpush.bf16.msra.mxu0 %v1601
    %2299 = vmatpush.bf16.msra.mxu0 %v1598
    %2300 = vmatmul.bf16.gmra.mxu0 %v366
    %v2301 = vpop.f32.mrf.mxu0
    %v2302 = vadd.f32 %v2289, %v2301
    %v2303 = vpop.f32.mrf.mxu0
    %2304 = vdwg.mxu0
    %2305 = vmatpush.bf16.msra.mxu0 %v1643
    %2306 = vmatpush.bf16.msra.mxu0 %v1640
    %2307 = vmatpush.bf16.msra.mxu0 %v1637
    %2308 = vmatpush.bf16.msra.mxu0 %v1634
    %2309 = vmatpush.bf16.msra.mxu0 %v1631
    %2310 = vmatpush.bf16.msra.mxu0 %v1628
    %2311 = vmatpush.bf16.msra.mxu0 %v1625
    %2312 = vmatpush.bf16.msra.mxu0 %v1622
    %2313 = vmatmul.bf16.gmra.mxu0 %v367
    %v2314 = vpop.f32.mrf.mxu0
    %v2315 = vadd.f32 %v2302, %v2314
    %v2316 = vpop.f32.mrf.mxu0
    %2317 = vdwg.mxu0
    %2318 = vmatpush.bf16.msra.mxu0 %v1667
    %2319 = vmatpush.bf16.msra.mxu0 %v1664
    %2320 = vmatpush.bf16.msra.mxu0 %v1661
    %2321 = vmatpush.bf16.msra.mxu0 %v1658
    %2322 = vmatpush.bf16.msra.mxu0 %v1655
    %2323 = vmatpush.bf16.msra.mxu0 %v1652
    %2324 = vmatpush.bf16.msra.mxu0 %v1649
    %2325 = vmatpush.bf16.msra.mxu0 %v1646
    %2326 = vmatmul.bf16.gmra.mxu0 %v368
    %v2327 = vpop.f32.mrf.mxu0
    %v2328 = vadd.f32 %v2315, %v2327
    %v2329 = vpop.f32.mrf.mxu0
    %2330 = vdwg.mxu0
    %2331 = vmatpush.bf16.msra.mxu0 %v1691
    %2332 = vmatpush.bf16.msra.mxu0 %v1688
    %2333 = vmatpush.bf16.msra.mxu0 %v1685
    %2334 = vmatpush.bf16.msra.mxu0 %v1682
    %2335 = vmatpush.bf16.msra.mxu0 %v1679
    %2336 = vmatpush.bf16.msra.mxu0 %v1676
    %2337 = vmatpush.bf16.msra.mxu0 %v1673
    %2338 = vmatpush.bf16.msra.mxu0 %v1670
    %2339 = vmatmul.bf16.gmra.mxu0 %v369
    %v2340 = vpop.f32.mrf.mxu0
    %v2341 = vadd.f32 %v2328, %v2340
    %v2342 = vpop.f32.mrf.mxu0
    %2343 = vdwg.mxu0
    %2344 = vmatpush.bf16.msra.mxu0 %v1715
    %2345 = vmatpush.bf16.msra.mxu0 %v1712
    %2346 = vmatpush.bf16.msra.mxu0 %v1709
    %2347 = vmatpush.bf16.msra.mxu0 %v1706
    %2348 = vmatpush.bf16.msra.mxu0 %v1703
    %2349 = vmatpush.bf16.msra.mxu0 %v1700
    %2350 = vmatpush.bf16.msra.mxu0 %v1697
    %2351 = vmatpush.bf16.msra.mxu0 %v1694
    %2352 = vmatmul.bf16.gmra.mxu0 %v370
    %v2353 = vpop.f32.mrf.mxu0
    %v2354 = vadd.f32 %v2341, %v2353
    %v2355 = vpop.f32.mrf.mxu0
    %2356 = vdwg.mxu0
    %2357 = vmatpush.bf16.msra.mxu0 %v1739
    %2358 = vmatpush.bf16.msra.mxu0 %v1736
    %2359 = vmatpush.bf16.msra.mxu0 %v1733
    %2360 = vmatpush.bf16.msra.mxu0 %v1730
    %2361 = vmatpush.bf16.msra.mxu0 %v1727
    %2362 = vmatpush.bf16.msra.mxu0 %v1724
    %2363 = vmatpush.bf16.msra.mxu0 %v1721
    %2364 = vmatpush.bf16.msra.mxu0 %v1718
    %2365 = vmatmul.bf16.gmra.mxu0 %v371
    %v2366 = vpop.f32.mrf.mxu0
    %v2367 = vadd.f32 %v2354, %v2366
    %v2368 = vpop.f32.mrf.mxu0
    %2369 = vdwg.mxu0
    %v2370 = vmax.f32 %v2107, 0.0
    %v2371 = vmax.f32 %v2237, 0.0
    %v2372 = vmax.f32 %v2367, 0.0
    %v2373 = vpack.c.bf16 %v2370, %v2370
    %v2374 = vpack.c.bf16 %v2371, %v2371
    %v2375 = vpack.c.bf16 %v2372, %v2372
    %v2376 = vld [vmem:[%s5] sm:$0xff]
    %v2377 = vld [vmem:[%s5 + $0x8] sm:$0xff]
    %v2378 = vld [vmem:[%s5 + $0x10] sm:$0xff]
    %v2379 = vld [vmem:[%s5 + $0x18] sm:$0xff]
    %v2380 = vld [vmem:[%s5 + $0x20] sm:$0xff]
    %v2381 = vld [vmem:[%s5 + $0x28] sm:$0xff]
    %v2382 = vld [vmem:[%s5 + $0x30] sm:$0xff]
    %v2383 = vld [vmem:[%s5 + $0x38] sm:$0xff]
    %v2384 = vld [vmem:[%s5 + $0x40] sm:$0xff]
    %v2385 = vld [vmem:[%s5 + $0x48] sm:$0xff]
    %v2386 = vld [vmem:[%s5 + $0x50] sm:$0xff]
    %v2387 = vld [vmem:[%s5 + $0x58] sm:$0xff]
    %v2388 = vld [vmem:[%s5 + $0x60] sm:$0xff]
    %v2389 = vld [vmem:[%s5 + $0x68] sm:$0xff]
    %v2390 = vld [vmem:[%s5 + $0x70] sm:$0xff]
    %v2391 = vld [vmem:[%s5 + $0x78] sm:$0xff]
    %v2392 = vld [vmem:[%s5 + $0x80] sm:$0xff]
    %v2393 = vld [vmem:[%s5 + $0x88] sm:$0xff]
    %v2394 = vld [vmem:[%s5 + $0x90] sm:$0xff]
    %v2395 = vld [vmem:[%s5 + $0x98] sm:$0xff]
    %v2396 = vld [vmem:[%s5 + $0xa0] sm:$0xff]
    %v2397 = vld [vmem:[%s5 + $0xa8] sm:$0xff]
    %v2398 = vld [vmem:[%s5 + $0xb0] sm:$0xff]
    %v2399 = vld [vmem:[%s5 + $0xb8] sm:$0xff]
    %v2400 = vld [vmem:[%s5 + $0xc0] sm:$0xff]
    %v2401 = vld [vmem:[%s5 + $0xc8] sm:$0xff]
    %v2402 = vld [vmem:[%s5 + $0xd0] sm:$0xff]
    %v2403 = vld [vmem:[%s5 + $0xd8] sm:$0xff]
    %v2404 = vld [vmem:[%s5 + $0xe0] sm:$0xff]
    %v2405 = vld [vmem:[%s5 + $0xe8] sm:$0xff]
    %v2406 = vld [vmem:[%s5 + $0xf0] sm:$0xff]
    %v2407 = vld [vmem:[%s5 + $0xf8] sm:$0xff]
    %v2408 = vld [vmem:[%s5 + $0x100] sm:$0xff]
    %v2409 = vld [vmem:[%s5 + $0x108] sm:$0xff]
    %v2410 = vld [vmem:[%s5 + $0x110] sm:$0xff]
    %v2411 = vld [vmem:[%s5 + $0x118] sm:$0xff]
    %v2412 = vld [vmem:[%s5 + $0x120] sm:$0xff]
    %v2413 = vld [vmem:[%s5 + $0x128] sm:$0xff]
    %v2414 = vld [vmem:[%s5 + $0x130] sm:$0xff]
    %v2415 = vld [vmem:[%s5 + $0x138] sm:$0xff]
    %v2416 = vld [vmem:[%s5 + $0x140] sm:$0xff]
    %v2417 = vld [vmem:[%s5 + $0x148] sm:$0xff]
    %v2418 = vld [vmem:[%s5 + $0x150] sm:$0xff]
    %v2419 = vld [vmem:[%s5 + $0x158] sm:$0xff]
    %v2420 = vld [vmem:[%s5 + $0x160] sm:$0xff]
    %v2421 = vld [vmem:[%s5 + $0x168] sm:$0xff]
    %v2422 = vld [vmem:[%s5 + $0x170] sm:$0xff]
    %v2423 = vld [vmem:[%s5 + $0x178] sm:$0xff]
    %v2424 = vld [vmem:[%s6] sm:$0x3]
    %v2426 = vperm.slane %v2424, 0
    %v2427 = vperm.slane %v2424, 1
    %v2478 = vunpack.c.l.b16 %v2376
    %v2479 = vunpack.c.h.b16 %v2376
    %v2480 = vunpack.c.l.b16 %v2377
    %v2481 = vunpack.c.h.b16 %v2377
    %v2482 = vunpack.c.l.b16 %v2378
    %v2483 = vunpack.c.h.b16 %v2378
    %v2484 = vunpack.c.l.b16 %v2379
    %v2485 = vunpack.c.h.b16 %v2379
    %v2486 = vunpack.c.l.b16 %v2380
    %v2487 = vunpack.c.h.b16 %v2380
    %v2488 = vunpack.c.l.b16 %v2381
    %v2489 = vunpack.c.h.b16 %v2381
    %v2490 = vunpack.c.l.b16 %v2382
    %v2491 = vunpack.c.h.b16 %v2382
    %v2492 = vunpack.c.l.b16 %v2383
    %v2493 = vunpack.c.h.b16 %v2383
    %v2494 = vunpack.c.l.b16 %v2384
    %v2495 = vunpack.c.h.b16 %v2384
    %v2496 = vunpack.c.l.b16 %v2385
    %v2497 = vunpack.c.h.b16 %v2385
    %v2498 = vunpack.c.l.b16 %v2386
    %v2499 = vunpack.c.h.b16 %v2386
    %v2500 = vunpack.c.l.b16 %v2387
    %v2501 = vunpack.c.h.b16 %v2387
    %v2502 = vunpack.c.l.b16 %v2388
    %v2503 = vunpack.c.h.b16 %v2388
    %v2504 = vunpack.c.l.b16 %v2389
    %v2505 = vunpack.c.h.b16 %v2389
    %v2506 = vunpack.c.l.b16 %v2390
    %v2507 = vunpack.c.h.b16 %v2390
    %v2508 = vunpack.c.l.b16 %v2391
    %v2509 = vunpack.c.h.b16 %v2391
    %v2510 = vunpack.c.l.b16 %v2392
    %v2511 = vunpack.c.h.b16 %v2392
    %v2512 = vunpack.c.l.b16 %v2393
    %v2513 = vunpack.c.h.b16 %v2393
    %v2514 = vunpack.c.l.b16 %v2394
    %v2515 = vunpack.c.h.b16 %v2394
    %v2516 = vunpack.c.l.b16 %v2395
    %v2517 = vunpack.c.h.b16 %v2395
    %v2518 = vunpack.c.l.b16 %v2396
    %v2519 = vunpack.c.h.b16 %v2396
    %v2520 = vunpack.c.l.b16 %v2397
    %v2521 = vunpack.c.h.b16 %v2397
    %v2522 = vunpack.c.l.b16 %v2398
    %v2523 = vunpack.c.h.b16 %v2398
    %v2524 = vunpack.c.l.b16 %v2399
    %v2525 = vunpack.c.h.b16 %v2399
    %v2526 = vunpack.c.l.b16 %v2400
    %v2527 = vunpack.c.h.b16 %v2400
    %v2528 = vunpack.c.l.b16 %v2401
    %v2529 = vunpack.c.h.b16 %v2401
    %v2530 = vunpack.c.l.b16 %v2402
    %v2531 = vunpack.c.h.b16 %v2402
    %v2532 = vunpack.c.l.b16 %v2403
    %v2533 = vunpack.c.h.b16 %v2403
    %v2534 = vunpack.c.l.b16 %v2404
    %v2535 = vunpack.c.h.b16 %v2404
    %v2536 = vunpack.c.l.b16 %v2405
    %v2537 = vunpack.c.h.b16 %v2405
    %v2538 = vunpack.c.l.b16 %v2406
    %v2539 = vunpack.c.h.b16 %v2406
    %v2540 = vunpack.c.l.b16 %v2407
    %v2541 = vunpack.c.h.b16 %v2407
    %v2542 = vunpack.c.l.b16 %v2408
    %v2543 = vunpack.c.h.b16 %v2408
    %v2544 = vunpack.c.l.b16 %v2409
    %v2545 = vunpack.c.h.b16 %v2409
    %v2546 = vunpack.c.l.b16 %v2410
    %v2547 = vunpack.c.h.b16 %v2410
    %v2548 = vunpack.c.l.b16 %v2411
    %v2549 = vunpack.c.h.b16 %v2411
    %v2550 = vunpack.c.l.b16 %v2412
    %v2551 = vunpack.c.h.b16 %v2412
    %v2552 = vunpack.c.l.b16 %v2413
    %v2553 = vunpack.c.h.b16 %v2413
    %v2554 = vunpack.c.l.b16 %v2414
    %v2555 = vunpack.c.h.b16 %v2414
    %v2556 = vunpack.c.l.b16 %v2415
    %v2557 = vunpack.c.h.b16 %v2415
    %v2558 = vunpack.c.l.b16 %v2416
    %v2559 = vunpack.c.h.b16 %v2416
    %v2560 = vunpack.c.l.b16 %v2417
    %v2561 = vunpack.c.h.b16 %v2417
    %v2562 = vunpack.c.l.b16 %v2418
    %v2563 = vunpack.c.h.b16 %v2418
    %v2564 = vunpack.c.l.b16 %v2419
    %v2565 = vunpack.c.h.b16 %v2419
    %v2566 = vunpack.c.l.b16 %v2420
    %v2567 = vunpack.c.h.b16 %v2420
    %v2568 = vunpack.c.l.b16 %v2421
    %v2569 = vunpack.c.h.b16 %v2421
    %v2570 = vunpack.c.l.b16 %v2422
    %v2571 = vunpack.c.h.b16 %v2422
    %v2572 = vunpack.c.l.b16 %v2423
    %v2573 = vunpack.c.h.b16 %v2423
    %v2574 = vpack.c.b16 %v2480, %v2478
    %v2575 = vpack.c.b16 %v2481, %v2479
    %v2576 = vpack.c.b16 %v2484, %v2482
    %v2577 = vpack.c.b16 %v2485, %v2483
    %v2578 = vpack.c.b16 %v2488, %v2486
    %v2579 = vpack.c.b16 %v2489, %v2487
    %v2580 = vpack.c.b16 %v2492, %v2490
    %v2581 = vpack.c.b16 %v2493, %v2491
    %v2582 = vpack.c.b16 %v2496, %v2494
    %v2583 = vpack.c.b16 %v2497, %v2495
    %v2584 = vpack.c.b16 %v2500, %v2498
    %v2585 = vpack.c.b16 %v2501, %v2499
    %v2586 = vpack.c.b16 %v2504, %v2502
    %v2587 = vpack.c.b16 %v2505, %v2503
    %v2588 = vpack.c.b16 %v2508, %v2506
    %v2589 = vpack.c.b16 %v2509, %v2507
    %v2590 = vpack.c.b16 %v2512, %v2510
    %v2591 = vpack.c.b16 %v2513, %v2511
    %v2592 = vpack.c.b16 %v2516, %v2514
    %v2593 = vpack.c.b16 %v2517, %v2515
    %v2594 = vpack.c.b16 %v2520, %v2518
    %v2595 = vpack.c.b16 %v2521, %v2519
    %v2596 = vpack.c.b16 %v2524, %v2522
    %v2597 = vpack.c.b16 %v2525, %v2523
    %v2598 = vpack.c.b16 %v2528, %v2526
    %v2599 = vpack.c.b16 %v2529, %v2527
    %v2600 = vpack.c.b16 %v2532, %v2530
    %v2601 = vpack.c.b16 %v2533, %v2531
    %v2602 = vpack.c.b16 %v2536, %v2534
    %v2603 = vpack.c.b16 %v2537, %v2535
    %v2604 = vpack.c.b16 %v2540, %v2538
    %v2605 = vpack.c.b16 %v2541, %v2539
    %v2606 = vpack.c.b16 %v2544, %v2542
    %v2607 = vpack.c.b16 %v2545, %v2543
    %v2608 = vpack.c.b16 %v2548, %v2546
    %v2609 = vpack.c.b16 %v2549, %v2547
    %v2610 = vpack.c.b16 %v2552, %v2550
    %v2611 = vpack.c.b16 %v2553, %v2551
    %v2612 = vpack.c.b16 %v2556, %v2554
    %v2613 = vpack.c.b16 %v2557, %v2555
    %v2614 = vpack.c.b16 %v2560, %v2558
    %v2615 = vpack.c.b16 %v2561, %v2559
    %v2616 = vpack.c.b16 %v2564, %v2562
    %v2617 = vpack.c.b16 %v2565, %v2563
    %v2618 = vpack.c.b16 %v2568, %v2566
    %v2619 = vpack.c.b16 %v2569, %v2567
    %v2620 = vpack.c.b16 %v2572, %v2570
    %v2621 = vpack.c.b16 %v2573, %v2571
    %2670 = vmatpush.bf16.msra.mxu0 %v2588
    %2671 = vmatpush.bf16.msra.mxu0 %v2586
    %2672 = vmatpush.bf16.msra.mxu0 %v2584
    %2673 = vmatpush.bf16.msra.mxu0 %v2582
    %2674 = vmatpush.bf16.msra.mxu0 %v2580
    %2675 = vmatpush.bf16.msra.mxu0 %v2578
    %2676 = vmatpush.bf16.msra.mxu0 %v2576
    %2677 = vmatpush.bf16.msra.mxu0 %v2574
    %2678 = vmatmul.bf16.gmra.mxu0 %v2373
    %v2679 = vpop.f32.mrf.mxu0
    %v2680 = vadd.f32 %v2426, %v2679
    %v2681 = vpop.f32.mrf.mxu0
    %2682 = vdwg.mxu0
    %2683 = vmatpush.bf16.msra.mxu0 %v2604
    %2684 = vmatpush.bf16.msra.mxu0 %v2602
    %2685 = vmatpush.bf16.msra.mxu0 %v2600
    %2686 = vmatpush.bf16.msra.mxu0 %v2598
    %2687 = vmatpush.bf16.msra.mxu0 %v2596
    %2688 = vmatpush.bf16.msra.mxu0 %v2594
    %2689 = vmatpush.bf16.msra.mxu0 %v2592
    %2690 = vmatpush.bf16.msra.mxu0 %v2590
    %2691 = vmatmul.bf16.gmra.mxu0 %v2374
    %v2692 = vpop.f32.mrf.mxu0
    %v2693 = vadd.f32 %v2680, %v2692
    %v2694 = vpop.f32.mrf.mxu0
    %2695 = vdwg.mxu0
    %2696 = vmatpush.bf16.msra.mxu0 %v2620
    %2697 = vmatpush.bf16.msra.mxu0 %v2618
    %2698 = vmatpush.bf16.msra.mxu0 %v2616
    %2699 = vmatpush.bf16.msra.mxu0 %v2614
    %2700 = vmatpush.bf16.msra.mxu0 %v2612
    %2701 = vmatpush.bf16.msra.mxu0 %v2610
    %2702 = vmatpush.bf16.msra.mxu0 %v2608
    %2703 = vmatpush.bf16.msra.mxu0 %v2606
    %2704 = vmatmul.bf16.gmra.mxu0 %v2375
    %v2705 = vpop.f32.mrf.mxu0
    %v2706 = vadd.f32 %v2693, %v2705
    %v2707 = vpop.f32.mrf.mxu0
    %2708 = vdwg.mxu0
    %2709 = vmatpush.bf16.msra.mxu0 %v2589
    %2710 = vmatpush.bf16.msra.mxu0 %v2587
    %2711 = vmatpush.bf16.msra.mxu0 %v2585
    %2712 = vmatpush.bf16.msra.mxu0 %v2583
    %2713 = vmatpush.bf16.msra.mxu0 %v2581
    %2714 = vmatpush.bf16.msra.mxu0 %v2579
    %2715 = vmatpush.bf16.msra.mxu0 %v2577
    %2716 = vmatpush.bf16.msra.mxu0 %v2575
    %2717 = vmatmul.bf16.gmra.mxu0 %v2373
    %v2718 = vpop.f32.mrf.mxu0
    %v2719 = vadd.f32 %v2427, %v2718
    %v2720 = vpop.f32.mrf.mxu0
    %2721 = vdwg.mxu0
    %2722 = vmatpush.bf16.msra.mxu0 %v2605
    %2723 = vmatpush.bf16.msra.mxu0 %v2603
    %2724 = vmatpush.bf16.msra.mxu0 %v2601
    %2725 = vmatpush.bf16.msra.mxu0 %v2599
    %2726 = vmatpush.bf16.msra.mxu0 %v2597
    %2727 = vmatpush.bf16.msra.mxu0 %v2595
    %2728 = vmatpush.bf16.msra.mxu0 %v2593
    %2729 = vmatpush.bf16.msra.mxu0 %v2591
    %2730 = vmatmul.bf16.gmra.mxu0 %v2374
    %v2731 = vpop.f32.mrf.mxu0
    %v2732 = vadd.f32 %v2719, %v2731
    %v2733 = vpop.f32.mrf.mxu0
    %2734 = vdwg.mxu0
    %2735 = vmatpush.bf16.msra.mxu0 %v2621
    %2736 = vmatpush.bf16.msra.mxu0 %v2619
    %2737 = vmatpush.bf16.msra.mxu0 %v2617
    %2738 = vmatpush.bf16.msra.mxu0 %v2615
    %2739 = vmatpush.bf16.msra.mxu0 %v2613
    %2740 = vmatpush.bf16.msra.mxu0 %v2611
    %2741 = vmatpush.bf16.msra.mxu0 %v2609
    %2742 = vmatpush.bf16.msra.mxu0 %v2607
    %2743 = vmatmul.bf16.gmra.mxu0 %v2375
    %v2744 = vpop.f32.mrf.mxu0
    %v2745 = vadd.f32 %v2732, %v2744
    %v2746 = vpop.f32.mrf.mxu0
    %2747 = vdwg.mxu0
    %v2748 = vmax.f32 %v2706, 0.0
    %v2749 = vmax.f32 %v2745, 0.0
    %v2750 = vpack.c.bf16 %v2748, %v2748
    %v2751 = vpack.c.bf16 %v2749, %v2749
    %v2752 = vld [vmem:[%s7] sm:$0xf]
    %v2753 = vld [vmem:[%s7 + $0x4] sm:$0xf]
    %v2754 = vld [vmem:[%s7 + $0x8] sm:$0xf]
    %v2755 = vld [vmem:[%s7 + $0xc] sm:$0xf]
    %v2756 = vld [vmem:[%s7 + $0x10] sm:$0xf]
    %v2757 = vld [vmem:[%s7 + $0x14] sm:$0xf]
    %v2758 = vld [vmem:[%s7 + $0x18] sm:$0xf]
    %v2759 = vld [vmem:[%s7 + $0x1c] sm:$0xf]
    %v2760 = vld [vmem:[%s7 + $0x20] sm:$0xf]
    %v2761 = vld [vmem:[%s7 + $0x24] sm:$0xf]
    %v2762 = vld [vmem:[%s7 + $0x28] sm:$0xf]
    %v2763 = vld [vmem:[%s7 + $0x2c] sm:$0xf]
    %v2764 = vld [vmem:[%s7 + $0x30] sm:$0xf]
    %v2765 = vld [vmem:[%s7 + $0x34] sm:$0xf]
    %v2766 = vld [vmem:[%s7 + $0x38] sm:$0xf]
    %v2767 = vld [vmem:[%s7 + $0x3c] sm:$0xf]
    %v2768 = vld [vmem:[%s7 + $0x40] sm:$0xf]
    %v2769 = vld [vmem:[%s7 + $0x44] sm:$0xf]
    %v2770 = vld [vmem:[%s7 + $0x48] sm:$0xf]
    %v2771 = vld [vmem:[%s7 + $0x4c] sm:$0xf]
    %v2772 = vld [vmem:[%s7 + $0x50] sm:$0xf]
    %v2773 = vld [vmem:[%s7 + $0x54] sm:$0xf]
    %v2774 = vld [vmem:[%s7 + $0x58] sm:$0xf]
    %v2775 = vld [vmem:[%s7 + $0x5c] sm:$0xf]
    %v2776 = vld [vmem:[%s7 + $0x60] sm:$0xf]
    %v2777 = vld [vmem:[%s7 + $0x64] sm:$0xf]
    %v2778 = vld [vmem:[%s7 + $0x68] sm:$0xf]
    %v2779 = vld [vmem:[%s7 + $0x6c] sm:$0xf]
    %v2780 = vld [vmem:[%s7 + $0x70] sm:$0xf]
    %v2781 = vld [vmem:[%s7 + $0x74] sm:$0xf]
    %v2782 = vld [vmem:[%s7 + $0x78] sm:$0xf]
    %v2783 = vld [vmem:[%s7 + $0x7c] sm:$0xf]
    %v2784 = vld [vmem:[%s8] sm:$0x1]
    %v2786 = vperm.slane %v2784, 0
    %v2820 = vunpack.c.l.b16 %v2752
    %v2821 = vunpack.c.l.b16 %v2753
    %v2822 = vunpack.c.l.b16 %v2754
    %v2823 = vunpack.c.l.b16 %v2755
    %v2824 = vunpack.c.l.b16 %v2756
    %v2825 = vunpack.c.l.b16 %v2757
    %v2826 = vunpack.c.l.b16 %v2758
    %v2827 = vunpack.c.l.b16 %v2759
    %v2828 = vunpack.c.l.b16 %v2760
    %v2829 = vunpack.c.l.b16 %v2761
    %v2830 = vunpack.c.l.b16 %v2762
    %v2831 = vunpack.c.l.b16 %v2763
    %v2832 = vunpack.c.l.b16 %v2764
    %v2833 = vunpack.c.l.b16 %v2765
    %v2834 = vunpack.c.l.b16 %v2766
    %v2835 = vunpack.c.l.b16 %v2767
    %v2836 = vunpack.c.l.b16 %v2768
    %v2837 = vunpack.c.l.b16 %v2769
    %v2838 = vunpack.c.l.b16 %v2770
    %v2839 = vunpack.c.l.b16 %v2771
    %v2840 = vunpack.c.l.b16 %v2772
    %v2841 = vunpack.c.l.b16 %v2773
    %v2842 = vunpack.c.l.b16 %v2774
    %v2843 = vunpack.c.l.b16 %v2775
    %v2844 = vunpack.c.l.b16 %v2776
    %v2845 = vunpack.c.l.b16 %v2777
    %v2846 = vunpack.c.l.b16 %v2778
    %v2847 = vunpack.c.l.b16 %v2779
    %v2848 = vunpack.c.l.b16 %v2780
    %v2849 = vunpack.c.l.b16 %v2781
    %v2850 = vunpack.c.l.b16 %v2782
    %v2851 = vunpack.c.l.b16 %v2783
    %v2852 = vpack.c.b16 %v2821, %v2820
    %v2853 = vpack.c.b16 %v2823, %v2822
    %v2854 = vpack.c.b16 %v2825, %v2824
    %v2855 = vpack.c.b16 %v2827, %v2826
    %v2856 = vpack.c.b16 %v2829, %v2828
    %v2857 = vpack.c.b16 %v2831, %v2830
    %v2858 = vpack.c.b16 %v2833, %v2832
    %v2859 = vpack.c.b16 %v2835, %v2834
    %v2860 = vpack.c.b16 %v2837, %v2836
    %v2861 = vpack.c.b16 %v2839, %v2838
    %v2862 = vpack.c.b16 %v2841, %v2840
    %v2863 = vpack.c.b16 %v2843, %v2842
    %v2864 = vpack.c.b16 %v2845, %v2844
    %v2865 = vpack.c.b16 %v2847, %v2846
    %v2866 = vpack.c.b16 %v2849, %v2848
    %v2867 = vpack.c.b16 %v2851, %v2850
    %2884 = vmatpush.bf16.msra.mxu0 %v2859
    %2885 = vmatpush.bf16.msra.mxu0 %v2858
    %2886 = vmatpush.bf16.msra.mxu0 %v2857
    %2887 = vmatpush.bf16.msra.mxu0 %v2856
    %2888 = vmatpush.bf16.msra.mxu0 %v2855
    %2889 = vmatpush.bf16.msra.mxu0 %v2854
    %2890 = vmatpush.bf16.msra.mxu0 %v2853
    %2891 = vmatpush.bf16.msra.mxu0 %v2852
    %2892 = vmatmul.bf16.gmra.mxu0 %v2750
    %v2893 = vpop.f32.mrf.mxu0
    %v2894 = vadd.f32 %v2786, %v2893
    %v2895 = vpop.f32.mrf.mxu0
    %2896 = vdwg.mxu0
    %2897 = vmatpush.bf16.msra.mxu0 %v2867
    %2898 = vmatpush.bf16.msra.mxu0 %v2866
    %2899 = vmatpush.bf16.msra.mxu0 %v2865
    %2900 = vmatpush.bf16.msra.mxu0 %v2864
    %2901 = vmatpush.bf16.msra.mxu0 %v2863
    %2902 = vmatpush.bf16.msra.mxu0 %v2862
    %2903 = vmatpush.bf16.msra.mxu0 %v2861
    %2904 = vmatpush.bf16.msra.mxu0 %v2860
    %2905 = vmatmul.bf16.gmra.mxu0 %v2751
    %v2906 = vpop.f32.mrf.mxu0
    %v2907 = vadd.f32 %v2894, %v2906
    %v2908 = vpop.f32.mrf.mxu0
    %2909 = vdwg.mxu0
    %v2910 = vxor.u32 %v2907, 2147483648
    %v2911 = vmul.f32 %v2910, 1.442695
    %v2912 = vpow.pop %v2911
    %v2913 = vadd.f32 %v2912, 1.0
    %v2914 = vrcp.pop %v2913
    %v2915 = vmul.f32 %v2913, %v2914
    %v2916 = vsub.f32 1.0, %v2915
    %v2917 = vmul.f32 %v2914, %v2916
    %v2918 = vadd.f32 %v2914, %v2917
    %vm2919 = vweird.f32 %v2913
    %vm2920 = vweird.f32 %v2914
    %vm2921 = vmor %vm2919, %vm2920
    %v2922 = vsel %vm2921, %v2914, %v2918
    %v2923 = vand.u32 2147483647, %v2913
    %vm2924 = vcmp.eq.f32.partialorder %v2923, 8.507059e+37
    %v2925 = vand.u32 %v2913, 2147483648
    %v2926 = vor.u32 1.1754944e-38, %v2925
    %v2927 = vsel %vm2924, %v2926, %v2922
    %v2928 = vmul.f32 1.0, %v2927
    %v2929 = vsel %vm119, %v2928, %v2907
    %2930 = vst [vmem:[%s10] sm:$0xff] %v2929
  $region45: #{simple_ensemble_forward.1} parent=0 // pred_fallthru
    _
  // Predicated region
  $region46: #{simple_ensemble_forward.1} parent=0 // pred_check
    _
  $region47: #{simple_ensemble_forward.1} parent=0 // pred_check_branch
    %2932 = sbr.rel (0) target = $region49
  $region48: #{simple_ensemble_forward.1} parent=0 // pred_region
    _
  $region49: #{simple_ensemble_forward.1} parent=0 // pred_fallthru
    _
  // Predicated region
  $region50: #{simple_ensemble_forward.1} parent=0 // pred_check
    _
  $region51: #{simple_ensemble_forward.1} parent=0 // pred_check_branch
    %2934 = sbr.rel (0) target = $region53
  $region52: #{simple_ensemble_forward.1} parent=0 // pred_region
    _
  $region53: #{simple_ensemble_forward.1} parent=0 // pred_fallthru
    _
  // Predicated region
  $region54: #{simple_ensemble_forward.1} parent=0 // pred_check
    _
  $region55: #{simple_ensemble_forward.1} parent=0 // pred_check_branch
    %2936 = sbr.rel (0) target = $region57
  $region56: #{simple_ensemble_forward.1} parent=0 // pred_region
    _
  $region57: #{simple_ensemble_forward.1} parent=0 // pred_fallthru
    _
  // Predicated region
  $region58: #{simple_ensemble_forward.1} parent=0 // pred_check
    _
  $region59: #{simple_ensemble_forward.1} parent=0 // pred_check_branch
    %2938 = sbr.rel (0) target = $region61
  $region60: #{simple_ensemble_forward.1} parent=0 // pred_region
    _
  $region61: #{simple_ensemble_forward.1} parent=0 // pred_fallthru
    _

</llo_original>
